<compile_context>
chip_gen: v5e
topology: v5e:2x2
jax: 0.10.0
libtpu: 0.0.40
codegen_flags: <defaults>
</compile_context>

<pallas_src>
import math

import jax
import jax.numpy as jnp
from jax.experimental import pallas as pl
from jax.experimental.pallas import tpu as pltpu


def _pos_embed_sine_kernel(y_ref, x_ref, const_ref, out_ref):
    # y_ref / x_ref: (1, 1, HW) f32   const_ref: (c_blk, 3) f32   out_ref: (1, c_blk, HW)
    y = y_ref[0]                        # (1, HW)  lane-dense row
    x = x_ref[0]                        # (1, HW)
    coef_y = const_ref[:, 0:1]          # (c_blk, 1) — sublane-major, no transpose needed
    coef_x = const_ref[:, 1:2]
    phase = const_ref[:, 2:3]
    # 2 muls + 2 adds + 1 sin per output element, stored straight into the lane-dense block.
    ang = y * coef_y + x * coef_x + phase          # (c_blk, HW)
    out_ref[0] = jnp.sin(ang).astype(out_ref.dtype)


def _round_up(x, m):
    return (x + m - 1) // m * m


def _vmem_capacity_bytes():
    try:
        return int(pltpu.get_tpu_info().vmem_capacity_bytes)
    except Exception:
        return 128 * 1024 * 1024   # conservative default (v5e/v6e size)


def _pick_channel_block(C, hw_pad, B, target_bytes, min_total_steps=4):
    """Largest legal channel chunk (divisor of C, (8,128)-tileable) whose padded f32 output
    block fits target_bytes while keeping >= min_total_steps grid steps for megacore."""
    divisors = [d for d in range(1, C + 1) if C % d == 0 and (d % 8 == 0 or d == C)]

    def blk_bytes(d):
        return _round_up(d, 8) * hw_pad * 4

    best = None
    for d in divisors:
        if blk_bytes(d) <= target_bytes and B * (C // d) >= min_total_steps:
            if best is None or d > best:
                best = d
    if best is None:                       # relax the megacore-steps requirement
        for d in divisors:
            if blk_bytes(d) <= target_bytes and (best is None or d > best):
                best = d
    if best is None:                       # relax the size target: smallest legal chunk
        best = min(divisors)
    return best


def position_embedding_sine(mask, num_pos_feats=64, temperature=10000,
                            normalize=False, scale=None, out_dtype=jnp.float32):
    """mask: (B, H, W) bool (True = padding). Returns (B, 2*num_pos_feats, H, W)."""
    if scale is not None and normalize is False:
        raise ValueError("normalize should be True if scale is passed")
    if scale is None:
        scale = 2 * math.pi

    B, H, W = mask.shape
    F = num_pos_feats
    C = 2 * F
    HW = H * W

    # --- cumsum + normalization hoisted to the wrapper (exact, ~1% of output HBM traffic) ---
    not_mask = jnp.logical_not(mask.astype(bool))
    y_embed = jnp.cumsum(not_mask, axis=1, dtype=jnp.float32)
    x_embed = jnp.cumsum(not_mask, axis=2, dtype=jnp.float32)
    if normalize:
        eps = 1e-6
        y_embed = y_embed / (y_embed[:, -1:, :] + eps) * scale
        x_embed = x_embed / (x_embed[:, :, -1:] + eps) * scale
    y_flat = y_embed.reshape(B, 1, HW)
    x_flat = x_embed.reshape(B, 1, HW)

    # --- per-output-channel constants packed into one (C, 3) array [coef_y, coef_x, phase].
    # Channels 0..F-1 come from y_embed, F..2F-1 from x_embed; within each half
    # dim_t[k] = temperature ** (2*(k//2)/F) and odd k uses cos == sin(. + pi/2)
    # (exact in value because dim_t[2m] == dim_t[2m+1]).
    # TODO(synk): for normalize=False with very large H/W (|arg| >> 100) the f32 rounding of
    # (arg + pi/2) can drift past ~1e-5 vs a true cos path; fine for normalized / typical maps.
    k = jnp.arange(C, dtype=jnp.int32)
    local = jnp.where(k < F, k, k - F)
    dim_t = jnp.asarray(temperature, jnp.float32) ** (
        2.0 * (local // 2).astype(jnp.float32) / float(F))
    inv_dim_t = 1.0 / dim_t
    coef_y = jnp.where(k < F, inv_dim_t, 0.0)
    coef_x = jnp.where(k >= F, inv_dim_t, 0.0)
    phase = (local % 2).astype(jnp.float32) * (math.pi / 2.0)
    consts = jnp.stack([coef_y, coef_x, phase], axis=1).astype(jnp.float32)   # (C, 3)

    # --- generation-aware tiling / VMEM sizing ---
    hw_pad = _round_up(HW, 128)
    vmem_cap = _vmem_capacity_bytes()
    target_bytes = (2 * 1024 * 1024 if vmem_cap <= 64 * 1024 * 1024
                    else 6 * 1024 * 1024)
    c_blk = _pick_channel_block(C, hw_pad, B, target_bytes, min_total_steps=4)
    n_c = C // c_blk

    out_itemsize = jnp.dtype(out_dtype).itemsize
    blk_out = _round_up(c_blk, 8) * hw_pad * out_itemsize
    blk_yx = 8 * hw_pad * 4                      # (1,1,HW) pads sublane dim to 8
    blk_const = _round_up(c_blk, 8) * 128 * 4    # (c_blk,3) pads lane dim to 128
    need = 2 * (blk_out + 2 * blk_yx + blk_const)          # double-buffered working set
    vmem_limit = int(min(max(2 * need, 8 * 1024 * 1024), vmem_cap // 2))

    out_flat = pl.pallas_call(
        _pos_embed_sine_kernel,
        out_shape=jax.ShapeDtypeStruct((B, C, HW), out_dtype),
        grid_spec=pltpu.PrefetchScalarGridSpec(
            num_scalar_prefetch=0,
            grid=(B, n_c),
            in_specs=[
                # y/x block index constant across the channel axis -> fetched once per batch.
                pl.BlockSpec((1, 1, HW), lambda b, c: (b, 0, 0)),
                pl.BlockSpec((1, 1, HW), lambda b, c: (b, 0, 0)),
                pl.BlockSpec((c_blk, 3), lambda b, c: (c, 0)),
            ],
            out_specs=pl.BlockSpec((1, c_blk, HW), lambda b, c: (b, c, 0)),
        ),
        compiler_params=pltpu.CompilerParams(
            dimension_semantics=("parallel", "parallel"),
            vmem_limit_bytes=vmem_limit,
        ),
    )(y_flat, x_flat, consts)

    # Free relayout: (B, C, H*W) and (B, C, H, W) share the same HBM layout.
    return out_flat.reshape(B, C, H, W)


def _reference_position_embedding_sine(mask, num_pos_feats=64, temperature=10000,
                                       normalize=False, scale=None):
    """Pure-JAX replica of the PyTorch forward (for correctness checking)."""
    if scale is None:
        scale = 2 * math.pi
    not_mask = ~mask
    y_embed = jnp.cumsum(not_mask, axis=1, dtype=jnp.float32)
    x_embed = jnp.cumsum(not_mask, axis=2, dtype=jnp.float32)
    if normalize:
        eps = 1e-6
        y_embed = y_embed / (y_embed[:, -1:, :] + eps) * scale
        x_embed = x_embed / (x_embed[:, :, -1:] + eps) * scale
    dim_t = jnp.arange(num_pos_feats, dtype=jnp.float32)
    dim_t = temperature ** (2 * (dim_t // 2) / num_pos_feats)
    pos_x = x_embed[:, :, :, None] / dim_t
    pos_y = y_embed[:, :, :, None] / dim_t
    B, H, W, _ = pos_x.shape
    pos_x = jnp.stack((jnp.sin(pos_x[:, :, :, 0::2]),
                       jnp.cos(pos_x[:, :, :, 1::2])), axis=4).reshape(B, H, W, -1)
    pos_y = jnp.stack((jnp.sin(pos_y[:, :, :, 0::2]),
                       jnp.cos(pos_y[:, :, :, 1::2])), axis=4).reshape(B, H, W, -1)
    pos = jnp.concatenate((pos_y, pos_x), axis=3).transpose(0, 3, 1, 2)
    return pos


if __name__ == "__main__":
    key = jax.random.PRNGKey(0)
    B, Cx, H, W = 2, 4, 16, 16
    num_pos_feats = 64

    kx, kh, kw = jax.random.split(key, 3)
    # x is only used for device/dtype in the PyTorch forward; build it anyway.
    x = jax.random.normal(kx, (B, Cx, H, W), dtype=jnp.float32)
    # DETR-style padding mask: True where padded (outside valid region, bottom/right).
    valid_h = jax.random.randint(kh, (B,), 8, H + 1)
    valid_w = jax.random.randint(kw, (B,), 8, W + 1)
    hh = jnp.arange(H)[None, :, None]
    ww = jnp.arange(W)[None, None, :]
    mask = (hh >= valid_h[:, None, None]) | (ww >= valid_w[:, None, None])  # (B, H, W) bool

    # normalize=True, scale=2*pi (DETR usage).
    pos = position_embedding_sine(mask, num_pos_feats=num_pos_feats,
                                  temperature=10000, normalize=True)
    pos = jax.block_until_ready(pos)
    ref = _reference_position_embedding_sine(mask, num_pos_feats=num_pos_feats,
                                             temperature=10000, normalize=True)
    assert pos.shape == (B, 2 * num_pos_feats, H, W)
    assert jnp.allclose(pos, ref, atol=2e-5, rtol=2e-5), "mismatch vs reference"

    # normalize=False (module default) branch.
    pos2 = jax.block_until_ready(
        position_embedding_sine(mask, num_pos_feats=num_pos_feats, normalize=False))
    ref2 = _reference_position_embedding_sine(mask, num_pos_feats=num_pos_feats,
                                              normalize=False)
    assert jnp.allclose(pos2, ref2, atol=2e-5, rtol=2e-5), "mismatch vs reference (no norm)"

    # Optional bf16-output variant (halves output HBM bytes); loose tolerance check.
    pos_bf16 = jax.block_until_ready(
        position_embedding_sine(mask, num_pos_feats=num_pos_feats, normalize=True,
                                out_dtype=jnp.bfloat16))
    assert pos_bf16.shape == (B, 2 * num_pos_feats, H, W)
    assert jnp.allclose(pos_bf16.astype(jnp.float32), ref, atol=2e-2, rtol=2e-2), \
        "mismatch vs reference (bf16)"

    print("KERNEL_OK")
</pallas_src>

<mosaic_0001>
module attributes {stable_mosaic.version = 11 : i64} {
  func.func @_pos_embed_sine_kernel(%arg0: i32, %arg1: i32, %arg2: memref<1x1x256xf32, #tpu.memory_space<vmem>>, %arg3: memref<1x1x256xf32, #tpu.memory_space<vmem>>, %arg4: memref<64x3xf32, #tpu.memory_space<vmem>>, %arg5: memref<1x64x256xf32, #tpu.memory_space<vmem>>) attributes {dimension_semantics = [#tpu.dimension_semantics<parallel>, #tpu.dimension_semantics<parallel>], iteration_bounds = array<i64: 2, 2>, scalar_prefetch = 0 : i64, scratch_operands = 0 : i64, tpu.core_type = #tpu.core_type<tc>, window_params = [{transform_indices = @transform_0, window_bounds = array<i64: 1, 1, 256>}, {transform_indices = @transform_1, window_bounds = array<i64: 1, 1, 256>}, {transform_indices = @transform_2, window_bounds = array<i64: 64, 3>}, {transform_indices = @transform_3, window_bounds = array<i64: 1, 64, 256>}]} {
    %c0 = arith.constant 0 : index
    %c0_0 = arith.constant 0 : index
    %c0_1 = arith.constant 0 : index
    %0 = vector.load %arg2[%c0, %c0_0, %c0_1] : memref<1x1x256xf32, #tpu.memory_space<vmem>>, vector<1x1x256xf32>
    %1 = vector.shape_cast %0 : vector<1x1x256xf32> to vector<1x256xf32>
    %c0_2 = arith.constant 0 : index
    %c0_3 = arith.constant 0 : index
    %c0_4 = arith.constant 0 : index
    %2 = vector.load %arg3[%c0_2, %c0_3, %c0_4] : memref<1x1x256xf32, #tpu.memory_space<vmem>>, vector<1x1x256xf32>
    %3 = vector.shape_cast %2 : vector<1x1x256xf32> to vector<1x256xf32>
    %c0_5 = arith.constant 0 : index
    %c0_6 = arith.constant 0 : index
    %4 = vector.load %arg4[%c0_5, %c0_6] : memref<64x3xf32, #tpu.memory_space<vmem>>, vector<64x1xf32>
    %c0_7 = arith.constant 0 : index
    %c1 = arith.constant 1 : index
    %5 = vector.load %arg4[%c0_7, %c1] : memref<64x3xf32, #tpu.memory_space<vmem>>, vector<64x1xf32>
    %c0_8 = arith.constant 0 : index
    %c2 = arith.constant 2 : index
    %6 = vector.load %arg4[%c0_8, %c2] : memref<64x3xf32, #tpu.memory_space<vmem>>, vector<64x1xf32>
    %7 = vector.broadcast %1 : vector<1x256xf32> to vector<64x256xf32>
    %8 = vector.broadcast %4 : vector<64x1xf32> to vector<64x256xf32>
    %9 = arith.mulf %7, %8 : vector<64x256xf32>
    %10 = vector.broadcast %3 : vector<1x256xf32> to vector<64x256xf32>
    %11 = vector.broadcast %5 : vector<64x1xf32> to vector<64x256xf32>
    %12 = arith.mulf %10, %11 : vector<64x256xf32>
    %13 = arith.addf %9, %12 : vector<64x256xf32>
    %14 = vector.broadcast %6 : vector<64x1xf32> to vector<64x256xf32>
    %15 = arith.addf %13, %14 : vector<64x256xf32>
    %16 = math.sin %15 : vector<64x256xf32>
    %c0_9 = arith.constant 0 : index
    %c0_10 = arith.constant 0 : index
    %c0_11 = arith.constant 0 : index
    %17 = vector.load %arg5[%c0_9, %c0_10, %c0_11] : memref<1x64x256xf32, #tpu.memory_space<vmem>>, vector<1x64x256xf32>
    %18 = vector.shape_cast %17 : vector<1x64x256xf32> to vector<64x256xf32>
    %19 = vector.shape_cast %16 : vector<64x256xf32> to vector<1x64x256xf32>
    tpu.vector_store %arg5[%c0_9, %c0_10, %c0_11], %19 {strides = array<i32>} : memref<1x64x256xf32, #tpu.memory_space<vmem>>, vector<1x64x256xf32>,
    return
  }
  func.func @transform_0(%arg0: i32, %arg1: i32) -> (i32, i32, i32) {
    %c0_i32 = arith.constant 0 : i32
    %c0_i32_0 = arith.constant 0 : i32
    %c0_i32_1 = arith.constant 0 : i32
    return %arg0, %c0_i32, %c0_i32_0 : i32, i32, i32
  }
  func.func @transform_1(%arg0: i32, %arg1: i32) -> (i32, i32, i32) {
    %c0_i32 = arith.constant 0 : i32
    %c0_i32_0 = arith.constant 0 : i32
    %c0_i32_1 = arith.constant 0 : i32
    return %arg0, %c0_i32, %c0_i32_0 : i32, i32, i32
  }
  func.func @transform_2(%arg0: i32, %arg1: i32) -> (i32, i32) {
    %c0_i32 = arith.constant 0 : i32
    %c0_i32_0 = arith.constant 0 : i32
    return %arg1, %c0_i32 : i32, i32
  }
  func.func @transform_3(%arg0: i32, %arg1: i32) -> (i32, i32, i32) {
    %c0_i32 = arith.constant 0 : i32
    %c0_i32_0 = arith.constant 0 : i32
    return %arg0, %arg1, %c0_i32 : i32, i32, i32
  }
}

</mosaic_0001>

<llo_original>
// kernel: tpu_custom_call.1
$region0: #{tpu_custom_call.1}
  #allocation0 [shape = 'u32[]', space=smem, size = 0x4, offset = 0x4, fixed_abs, tag = 'smem constant byte address 0x4 - core index']
  #allocation1 [shape = 'u32[72,128]{1,0:T(1,128)}', space=vmem, size = 0x9000, scoped, tag = 'internal scratch']
  %s0 = inlined_call_operand.vmem [shape: f32[2,1,256], index: 0, kind: input, shape index: {}]
  %s1 = inlined_call_operand.vmem [shape: f32[2,1,256], index: 1, kind: input, shape index: {}]
  %s2 = inlined_call_operand.vmem [shape: f32[128,3], index: 2, kind: input, shape index: {}]
  %s3 = inlined_call_operand.hbm [shape: f32[2,128,256], index: 3, kind: output, shape index: {}]
  %s4 = sld [smem:[#allocation0]]
  $region45: #{tpu_custom_call.1} parent=0
    _
  %s6 = ssub.s32 1, %s4
  %s7 = scalar_select 0, %s6, %s4
  $region1: #{tpu_custom_call.1} parent=0
    #allocation2 [shape = 'u8[131072]{0}', space=vmem, size = 0x20000, scoped, tag = 'output window, operand 0']
    #allocation3 [shape = 's32[2]{0}', space=sflag, size = 0x8, scoped, tag = 'scoped memory for tpu_custom_call.1']
    %8 = vsyncpa [#allocation3], 0
    %s9 = scalar_lea.sflag [#allocation3], 1
    %10 = vsyncpa %s9, 0
    loop: start=0, step=1, limit=6
    $region2: #{tpu_custom_call.1} parent=1 // loop_pre_header
      _
    $region3: #{tpu_custom_call.1} parent=1 // loop_header
      %s12 = sphi 0, %s16
      %p13 = scmp.ge.s32.totalorder %s12, 6
      %s19 = sphi 0, %s31
      %s20 = sphi 0, %s27
      %s21 = sphi 0, %s19
      %s22 = sphi 0, %s20
      %s23 = sphi 0, %s21
      %s24 = sphi 0, %s22
      %s34 = sphi 0, %s36
      %s37 = sphi 0, %s34
      %s38 = sphi 0, %s37
      %s54 = sphi 0, %s38
      %s60 = sphi 0, %s62
      %s63 = sphi 0, %s60
      %s64 = sphi 0, %s63
      %s80 = sphi 0, %s64
      %s86 = sphi 0, %s88
      %s89 = sphi 0, %s86
      %s90 = sphi 0, %s89
      %s106 = sphi 0, %s90
      %s114 = sphi 0, %s116
      %s117 = sphi 0, %s114
      %s118 = sphi 0, %s117
      %s134 = sphi 0, %s118
    $region4: #{tpu_custom_call.1} parent=1 // loop_header_branch
      %15 = sbr.rel (%p13) target = $region8
    $region5: #{tpu_custom_call.1} parent=1 // loop_body
      %s17 = ssub.s32 %s12, 1
      %s18 = ssub.s32 %s12, 2
      %s25 = sadd.s32 1, %s20
      %p26 = scmp.ge.s32.totalorder %s25, 2
      %s27 = scalar_select %p26, 0, %s25
      %s28 = sadd.s32 1, %s19
      %s29 = scalar_select %p26, %s28, %s19
      %p30 = scmp.ge.s32.totalorder %s29, 2
      %s31 = scalar_select %p30, 0, %s29
      %s32 = ssub.s32 %s19, %s31
      %p33 = scmp.eq.s32.totalorder %s32, 0
      %s35 = sadd.s32 %s34, 1
      %s36 = scalar_select %p33, %s34, %s35
      %p39 = pneg %p33
      %p40 = scmp.eq.s32.totalorder %s12, 3
      %p41 = por %p39, %p40
      %p42 = scmp.ne.s32.totalorder %s34, %s37
      %p43 = scmp.eq.s32.totalorder %s12, 0
      %p44 = por %p42, %p43
      %p45 = scmp.ne.s32.totalorder %s34, %s37
      %p46 = scmp.eq.s32.totalorder %s17, 3
      %p47 = por %p45, %p46
      %p48 = scmp.ne.s32.totalorder %s37, %s38
      %p49 = scmp.eq.s32.totalorder %s17, 0
      %p50 = por %p48, %p49
      %p51 = scmp.ne.s32.totalorder %s37, %s38
      %p52 = scmp.eq.s32.totalorder %s18, 3
      %p53 = por %p51, %p52
      %p55 = scmp.ne.s32.totalorder %s38, %s54
      %p56 = scmp.eq.s32.totalorder %s18, 0
      %p57 = por %p55, %p56
      %s58 = ssub.s32 %s19, %s31
      %p59 = scmp.eq.s32.totalorder %s58, 0
      %s61 = sadd.s32 %s60, 1
      %s62 = scalar_select %p59, %s60, %s61
      %p65 = pneg %p59
      %p66 = scmp.eq.s32.totalorder %s12, 3
      %p67 = por %p65, %p66
      %p68 = scmp.ne.s32.totalorder %s60, %s63
      %p69 = scmp.eq.s32.totalorder %s12, 0
      %p70 = por %p68, %p69
      %p71 = scmp.ne.s32.totalorder %s60, %s63
      %p72 = scmp.eq.s32.totalorder %s17, 3
      %p73 = por %p71, %p72
      %p74 = scmp.ne.s32.totalorder %s63, %s64
      %p75 = scmp.eq.s32.totalorder %s17, 0
      %p76 = por %p74, %p75
      %p77 = scmp.ne.s32.totalorder %s63, %s64
      %p78 = scmp.eq.s32.totalorder %s18, 3
      %p79 = por %p77, %p78
      %p81 = scmp.ne.s32.totalorder %s64, %s80
      %p82 = scmp.eq.s32.totalorder %s18, 0
      %p83 = por %p81, %p82
      %s84 = ssub.s32 %s20, %s27
      %p85 = scmp.eq.s32.totalorder %s84, 0
      %s87 = sadd.s32 %s86, 1
      %s88 = scalar_select %p85, %s86, %s87
      %p91 = pneg %p85
      %p92 = scmp.eq.s32.totalorder %s12, 3
      %p93 = por %p91, %p92
      %p94 = scmp.ne.s32.totalorder %s86, %s89
      %p95 = scmp.eq.s32.totalorder %s12, 0
      %p96 = por %p94, %p95
      %p97 = scmp.ne.s32.totalorder %s86, %s89
      %p98 = scmp.eq.s32.totalorder %s17, 3
      %p99 = por %p97, %p98
      %p100 = scmp.ne.s32.totalorder %s89, %s90
      %p101 = scmp.eq.s32.totalorder %s17, 0
      %p102 = por %p100, %p101
      %p103 = scmp.ne.s32.totalorder %s89, %s90
      %p104 = scmp.eq.s32.totalorder %s18, 3
      %p105 = por %p103, %p104
      %p107 = scmp.ne.s32.totalorder %s90, %s106
      %p108 = scmp.eq.s32.totalorder %s18, 0
      %p109 = por %p107, %p108
      %s110 = ssub.s32 %s19, %s31
      %s111 = ssub.s32 %s20, %s27
      %s112 = sor.u32 %s110, %s111
      %p113 = scmp.eq.s32.totalorder %s112, 0
      %s115 = sadd.s32 %s114, 1
      %s116 = scalar_select %p113, %s114, %s115
      %p119 = pneg %p113
      %p120 = scmp.eq.s32.totalorder %s12, 3
      %p121 = por %p119, %p120
      %p122 = scmp.ne.s32.totalorder %s114, %s117
      %p123 = scmp.eq.s32.totalorder %s12, 0
      %p124 = por %p122, %p123
      %p125 = scmp.ne.s32.totalorder %s114, %s117
      %p126 = scmp.eq.s32.totalorder %s17, 3
      %p127 = por %p125, %p126
      %p128 = scmp.ne.s32.totalorder %s117, %s118
      %p129 = scmp.eq.s32.totalorder %s17, 0
      %p130 = por %p128, %p129
      %p131 = scmp.ne.s32.totalorder %s117, %s118
      %p132 = scmp.eq.s32.totalorder %s18, 3
      %p133 = por %p131, %p132
      %p135 = scmp.ne.s32.totalorder %s118, %s134
      %p136 = scmp.eq.s32.totalorder %s18, 0
      %p137 = por %p135, %p136
      %p138 = scmp.le.s32.totalorder 1, %s12
      %p139 = scmp.lt.s32.totalorder %s12, 5
      %p140 = pnand %p138, %p139
      %p141 = pneg %p140
      // Predicated region
      $region9: #{tpu_custom_call.1} parent=5 // pred_check
        _
      $region10: #{tpu_custom_call.1} parent=5 // pred_check_branch
        %143 = sbr.rel (%p140) target = $region12
      $region11: #{tpu_custom_call.1} parent=5 // pred_region
        %s144 = ssub.s32 %s12, 1
      $region12: #{tpu_custom_call.1} parent=5 // pred_fallthru
        _
      %p145 = scmp.lt.s32.totalorder %s12, 4
      // Predicated region
      $region13: #{tpu_custom_call.1} parent=5 // pred_check
        %p146 = pneg %p145
      $region14: #{tpu_custom_call.1} parent=5 // pred_check_branch
        %148 = sbr.rel (%p146) target = $region16
      $region15: #{tpu_custom_call.1} parent=5 // pred_region
        // Predicated region
        $region17: #{tpu_custom_call.1} parent=15 // pred_check
          %p149 = pneg %p44
        $region18: #{tpu_custom_call.1} parent=15 // pred_check_branch
          %151 = sbr.rel (%p149) target = $region20
        $region19: #{tpu_custom_call.1} parent=15 // pred_region
          %p152 = scmp.lt.s32.totalorder %s19, 1
          %s153 = scalar_select %p152, %s19, 1
          %s154 = smul.addr %s153, 2
          %s155 = scalar_lea.vmem %s0, %s154
        $region20: #{tpu_custom_call.1} parent=15 // pred_fallthru
          _
        // Predicated region
        $region21: #{tpu_custom_call.1} parent=15 // pred_check
          %p156 = pneg %p70
        $region22: #{tpu_custom_call.1} parent=15 // pred_check_branch
          %158 = sbr.rel (%p156) target = $region24
        $region23: #{tpu_custom_call.1} parent=15 // pred_region
          %p159 = scmp.lt.s32.totalorder %s19, 1
          %s160 = scalar_select %p159, %s19, 1
          %s161 = smul.addr %s160, 2
          %s162 = scalar_lea.vmem %s1, %s161
        $region24: #{tpu_custom_call.1} parent=15 // pred_fallthru
          _
        // Predicated region
        $region25: #{tpu_custom_call.1} parent=15 // pred_check
          %p163 = pneg %p96
        $region26: #{tpu_custom_call.1} parent=15 // pred_check_branch
          %165 = sbr.rel (%p163) target = $region28
        $region27: #{tpu_custom_call.1} parent=15 // pred_region
          %s166 = smul.u32 8, %s20
          %p167 = scmp.lt.s32.totalorder %s166, 15
          %s168 = scalar_select %p167, %s166, 15
          %s169 = smul.addr %s168, 8
          %s170 = scalar_lea.vmem %s2, %s169
          %s171 = smul.u32 8, %s20
        $region28: #{tpu_custom_call.1} parent=15 // pred_fallthru
          _
      $region16: #{tpu_custom_call.1} parent=5 // pred_fallthru
        _
      %p172 = scmp.le.s32.totalorder 1, %s12
      %p173 = scmp.lt.s32.totalorder %s12, 5
      %p174 = pnand %p172, %p173
      %p175 = pneg %p174
      // Predicated region
      $region29: #{tpu_custom_call.1} parent=5 // pred_check
        _
      $region30: #{tpu_custom_call.1} parent=5 // pred_check_branch
        %177 = sbr.rel (%p174) target = $region32
      $region31: #{tpu_custom_call.1} parent=5 // pred_region
        %s178 = ssub.s32 %s12, 1
        %p179 = scmp.lt.s32.totalorder %s21, 1
        %s180 = scalar_select %p179, %s21, 1
        %s181 = smul.addr %s180, 2
        %s182 = scalar_lea.vmem %s0, %s181
        %p183 = pneg %p50
        %p184 = pneg %p47
        %p185 = scmp.lt.s32.totalorder %s21, 1
        %s186 = scalar_select %p185, %s21, 1
        %s187 = smul.addr %s186, 2
        %s188 = scalar_lea.vmem %s1, %s187
        %p189 = pneg %p76
        %p190 = pneg %p73
        %s191 = smul.u32 8, %s22
        %p192 = scmp.lt.s32.totalorder %s191, 15
        %s193 = scalar_select %p192, %s191, 15
        %s194 = smul.addr %s193, 8
        %s195 = scalar_lea.vmem %s2, %s194
        %p196 = pneg %p102
        %p197 = pneg %p99
        %p198 = pneg %p130
        %p199 = pneg %p127
        %s200 = sand.u32 %s117, 1
        %s201 = scalar_lea.sflag [#allocation3], %s200
        %s202 = sand.u32 %s117, 1
        %s203 = smul.addr %s202, 128
        %s204 = scalar_lea.vmem [#allocation2], %s203
        %p205 = scmp.lt.s32.totalorder %s21, 1
        %s206 = scalar_select %p205, %s21, 1
        %s207 = smul.addr %s206, 2
        %s208 = scalar_lea.vmem %s0, %s207
        %p209 = scmp.lt.s32.totalorder %s21, 1
        %s210 = scalar_select %p209, %s21, 1
        %s211 = smul.addr %s210, 2
        %s212 = scalar_lea.vmem %s1, %s211
        %s213 = smul.u32 8, %s22
        %p214 = scmp.lt.s32.totalorder %s213, 15
        %s215 = scalar_select %p214, %s213, 15
        %s216 = smul.addr %s215, 8
        %s217 = scalar_lea.vmem %s2, %s216
        %s218 = smul.u32 8, %s22
        %s219 = smul.u32 8, %s22
        %v220 = vld [vmem:[%s208] sm:$0x3]
        %v221 = vld [vmem:[%s212] sm:$0x3]
        %v222 = vld [vmem:[%s217] sm:$0xff]
        %v223 = vld [vmem:[%s217 + $0x8] sm:$0xff]
        %v224 = vld [vmem:[%s217 + $0x10] sm:$0xff]
        %v225 = vld [vmem:[%s217 + $0x18] sm:$0xff]
        %v226 = vld [vmem:[%s217 + $0x20] sm:$0xff]
        %v227 = vld [vmem:[%s217 + $0x28] sm:$0xff]
        %v228 = vld [vmem:[%s217 + $0x30] sm:$0xff]
        %v229 = vld [vmem:[%s217 + $0x38] sm:$0xff]
        %v231 = vperm.slane %v220, 0
        %v232 = vperm.slane %v220, 1
        %236 = vset.pattern.permute.xlu0 0
        %237 = vperm.xlu0 %236, %v222
        %v238 = vpop.permute.xlu0 %237
        %241 = vset.pattern.permute.xlu0 0
        %242 = vperm.xlu0 %241, %v223
        %v243 = vpop.permute.xlu0 %242
        %246 = vset.pattern.permute.xlu0 0
        %247 = vperm.xlu0 %246, %v224
        %v248 = vpop.permute.xlu0 %247
        %251 = vset.pattern.permute.xlu0 0
        %252 = vperm.xlu0 %251, %v225
        %v253 = vpop.permute.xlu0 %252
        %256 = vset.pattern.permute.xlu0 0
        %257 = vperm.xlu0 %256, %v226
        %v258 = vpop.permute.xlu0 %257
        %261 = vset.pattern.permute.xlu0 0
        %262 = vperm.xlu0 %261, %v227
        %v263 = vpop.permute.xlu0 %262
        %266 = vset.pattern.permute.xlu0 0
        %267 = vperm.xlu0 %266, %v228
        %v268 = vpop.permute.xlu0 %267
        %271 = vset.pattern.permute.xlu0 0
        %272 = vperm.xlu0 %271, %v229
        %v273 = vpop.permute.xlu0 %272
        %v275 = vmul.f32 %v231, %v238
        %v276 = vmul.f32 %v232, %v238
        %v277 = vmul.f32 %v231, %v243
        %v278 = vmul.f32 %v232, %v243
        %v279 = vmul.f32 %v231, %v248
        %v280 = vmul.f32 %v232, %v248
        %v281 = vmul.f32 %v231, %v253
        %v282 = vmul.f32 %v232, %v253
        %v283 = vmul.f32 %v231, %v258
        %v284 = vmul.f32 %v232, %v258
        %v285 = vmul.f32 %v231, %v263
        %v286 = vmul.f32 %v232, %v263
        %v287 = vmul.f32 %v231, %v268
        %v288 = vmul.f32 %v232, %v268
        %v289 = vmul.f32 %v231, %v273
        %v290 = vmul.f32 %v232, %v273
        %v292 = vperm.slane %v221, 0
        %v293 = vperm.slane %v221, 1
        %296 = vset.pattern.permute.xlu0 1
        %297 = vperm.xlu0 %296, %v222
        %v298 = vpop.permute.xlu0 %297
        %300 = vset.pattern.permute.xlu0 1
        %301 = vperm.xlu0 %300, %v223
        %v302 = vpop.permute.xlu0 %301
        %304 = vset.pattern.permute.xlu0 1
        %305 = vperm.xlu0 %304, %v224
        %v306 = vpop.permute.xlu0 %305
        %308 = vset.pattern.permute.xlu0 1
        %309 = vperm.xlu0 %308, %v225
        %v310 = vpop.permute.xlu0 %309
        %312 = vset.pattern.permute.xlu0 1
        %313 = vperm.xlu0 %312, %v226
        %v314 = vpop.permute.xlu0 %313
        %316 = vset.pattern.permute.xlu0 1
        %317 = vperm.xlu0 %316, %v227
        %v318 = vpop.permute.xlu0 %317
        %320 = vset.pattern.permute.xlu0 1
        %321 = vperm.xlu0 %320, %v228
        %v322 = vpop.permute.xlu0 %321
        %324 = vset.pattern.permute.xlu0 1
        %325 = vperm.xlu0 %324, %v229
        %v326 = vpop.permute.xlu0 %325
        %v328 = vmul.f32 %v292, %v298
        %v329 = vmul.f32 %v293, %v298
        %v330 = vmul.f32 %v292, %v302
        %v331 = vmul.f32 %v293, %v302
        %v332 = vmul.f32 %v292, %v306
        %v333 = vmul.f32 %v293, %v306
        %v334 = vmul.f32 %v292, %v310
        %v335 = vmul.f32 %v293, %v310
        %v336 = vmul.f32 %v292, %v314
        %v337 = vmul.f32 %v293, %v314
        %v338 = vmul.f32 %v292, %v318
        %v339 = vmul.f32 %v293, %v318
        %v340 = vmul.f32 %v292, %v322
        %v341 = vmul.f32 %v293, %v322
        %v342 = vmul.f32 %v292, %v326
        %v343 = vmul.f32 %v293, %v326
        %v344 = vadd.f32 %v275, %v328
        %v345 = vadd.f32 %v276, %v329
        %v346 = vadd.f32 %v277, %v330
        %v347 = vadd.f32 %v278, %v331
        %v348 = vadd.f32 %v279, %v332
        %v349 = vadd.f32 %v280, %v333
        %v350 = vadd.f32 %v281, %v334
        %v351 = vadd.f32 %v282, %v335
        %v352 = vadd.f32 %v283, %v336
        %v353 = vadd.f32 %v284, %v337
        %v354 = vadd.f32 %v285, %v338
        %v355 = vadd.f32 %v286, %v339
        %v356 = vadd.f32 %v287, %v340
        %v357 = vadd.f32 %v288, %v341
        %v358 = vadd.f32 %v289, %v342
        %v359 = vadd.f32 %v290, %v343
        %360 = vset.pattern.permute.xlu0 2
        %361 = vperm.xlu0 %360, %v222
        %v362 = vpop.permute.xlu0 %361
        %364 = vset.pattern.permute.xlu0 2
        %365 = vperm.xlu0 %364, %v223
        %v366 = vpop.permute.xlu0 %365
        %368 = vset.pattern.permute.xlu0 2
        %369 = vperm.xlu0 %368, %v224
        %v370 = vpop.permute.xlu0 %369
        %372 = vset.pattern.permute.xlu0 2
        %373 = vperm.xlu0 %372, %v225
        %v374 = vpop.permute.xlu0 %373
        %376 = vset.pattern.permute.xlu0 2
        %377 = vperm.xlu0 %376, %v226
        %v378 = vpop.permute.xlu0 %377
        %380 = vset.pattern.permute.xlu0 2
        %381 = vperm.xlu0 %380, %v227
        %v382 = vpop.permute.xlu0 %381
        %384 = vset.pattern.permute.xlu0 2
        %385 = vperm.xlu0 %384, %v228
        %v386 = vpop.permute.xlu0 %385
        %388 = vset.pattern.permute.xlu0 2
        %389 = vperm.xlu0 %388, %v229
        %v390 = vpop.permute.xlu0 %389
        %v392 = vadd.f32 %v344, %v362
        %v393 = vadd.f32 %v345, %v362
        %v394 = vadd.f32 %v346, %v366
        %v395 = vadd.f32 %v347, %v366
        %v396 = vadd.f32 %v348, %v370
        %v397 = vadd.f32 %v349, %v370
        %v398 = vadd.f32 %v350, %v374
        %v399 = vadd.f32 %v351, %v374
        %v400 = vadd.f32 %v352, %v378
        %v401 = vadd.f32 %v353, %v378
        %v402 = vadd.f32 %v354, %v382
        %v403 = vadd.f32 %v355, %v382
        %v404 = vadd.f32 %v356, %v386
        %v405 = vadd.f32 %v357, %v386
        %v406 = vadd.f32 %v358, %v390
        %v407 = vadd.f32 %v359, %v390
        %v408 = vand.u32 2147483647, %v392
        %vm409 = vcmp.le.f32.partialorder %v408, 0.7853982
        %vm410 = vcmp.lt.s32.totalorder %v392, 0
        %v411 = vand.u32 %v392, 2139095040
        %v412 = vshrl.u32 %v411, 23
        %v413 = vsub.s32 %v412, 127
        %v414 = vand.u32 2147483647, %v392
        %v415 = vand.u32 %v414, 8388607
        %v416 = vor.u32 %v415, 8388608
        %v417 = vsub.s32 0, %v416
        %v418 = vadd.s32 %v413, 1
        %vm419 = vcmp.gt.s32.totalorder %v418, 0
        %v420 = vsel %vm419, %v418, 0
        %v421 = vshrl.u32 %v420, 5
        %v422 = vand.u32 %v420, 31
        %v423 = vsub.s32 32, %v422
        %v424 = vshrl.u32 683565275, %v423
        %v425 = vshll.u32 683565275, %v422
        %v426 = vshrl.u32 2475754826, %v423
        %v427 = vor.u32 %v425, %v426
        %v428 = vshll.u32 2475754826, %v422
        %v429 = vshrl.u32 2131351028, %v423
        %v430 = vor.u32 %v428, %v429
        %v431 = vshll.u32 2131351028, %v422
        %v432 = vshrl.u32 2102212464, %v423
        %v433 = vor.u32 %v431, %v432
        %v434 = vshll.u32 2102212464, %v422
        %v435 = vshrl.u32 920167782, %v423
        %v436 = vor.u32 %v434, %v435
        %v437 = vshll.u32 920167782, %v422
        %v438 = vshrl.u32 1326507024, %v423
        %v439 = vor.u32 %v437, %v438
        %vm440 = vcmp.lt.s32.totalorder %v421, 1
        %vm441 = vcmp.lt.s32.totalorder %v421, 2
        %vm442 = vcmp.lt.s32.totalorder %v421, 3
        %vm443 = vcmp.lt.s32.totalorder %v421, 4
        %v444 = vsel %vm440, %v424, %v427
        %v445 = vsel %vm443, %v433, 2102212464
        %v446 = vsel %vm442, %v430, %v445
        %v447 = vsel %vm441, %v444, %v446
        %v448 = vsel %vm440, %v427, %v430
        %v449 = vsel %vm443, %v436, 920167782
        %v450 = vsel %vm442, %v433, %v449
        %v451 = vsel %vm441, %v448, %v450
        %v452 = vsel %vm440, %v430, %v433
        %v453 = vsel %vm443, %v439, 1326507024
        %v454 = vsel %vm442, %v436, %v453
        %v455 = vsel %vm441, %v452, %v454
        %v456 = vshll.u32 %v416, 8
        %v457 = vand.u32 %v456, 65535
        %v458 = vshrl.u32 %v456, 16
        %v459 = vand.u32 %v455, 65535
        %v460 = vshrl.u32 %v455, 16
        %v461 = vmul.u32 %v457, %v459
        %v462 = vmul.u32 %v457, %v460
        %v463 = vmul.u32 %v458, %v459
        %v464 = vmul.u32 %v458, %v460
        %v465 = vshll.u32 %v462, 16
        %v466 = vshrl.u32 %v462, 16
        %v467 = vshll.u32 %v463, 16
        %v468 = vshrl.u32 %v463, 16
        %vm469 = vc.u32 %v461, %v465
        %v470 = vsel %vm469, 1, 0
        %v471 = vadd.s32 %v461, %v465
        %v472 = vadd.s32 %v464, %v470
        %vm473 = vc.u32 %v471, %v467
        %v474 = vsel %vm473, 1, 0
        %v475 = vadd.s32 %v471, %v467
        %v476 = vadd.s32 %v472, %v474
        %v477 = vadd.s32 %v476, %v466
        %v478 = vadd.s32 %v477, %v468
        %v479 = vand.u32 %v456, 65535
        %v480 = vshrl.u32 %v456, 16
        %v481 = vand.u32 %v451, 65535
        %v482 = vshrl.u32 %v451, 16
        %v483 = vmul.u32 %v479, %v481
        %v484 = vmul.u32 %v479, %v482
        %v485 = vmul.u32 %v480, %v481
        %v486 = vmul.u32 %v480, %v482
        %v487 = vshll.u32 %v484, 16
        %v488 = vshrl.u32 %v484, 16
        %v489 = vshll.u32 %v485, 16
        %v490 = vshrl.u32 %v485, 16
        %vm491 = vc.u32 %v483, %v487
        %v492 = vsel %vm491, 1, 0
        %v493 = vadd.s32 %v483, %v487
        %v494 = vadd.s32 %v486, %v492
        %vm495 = vc.u32 %v493, %v489
        %v496 = vsel %vm495, 1, 0
        %v497 = vadd.s32 %v493, %v489
        %v498 = vadd.s32 %v494, %v496
        %v499 = vadd.s32 %v498, %v488
        %v500 = vadd.s32 %v499, %v490
        %v501 = vmul.u32 %v456, %v447
        %v502 = vadd.s32 %v478, %v497
        %vm503 = vc.u32 %v478, %v497
        %v504 = vadd.s32 %v500, 1
        %v505 = vsel %vm503, %v504, %v500
        %v506 = vadd.s32 %v501, %v505
        %v507 = vadd.s32 %v506, 536870912
        %v508 = vshrl.u32 %v507, 30
        %v509 = vshll.u32 %v508, 30
        %v510 = vsub.s32 %v506, %v509
        %vm511 = vcmp.lt.s32.totalorder %v510, 0
        %v512 = vsub.s32 0, %v510
        %v513 = vsel %vm511, %v512, %v510
        %v514 = vclz %v513
        %v515 = vsub.s32 %v514, 2
        %vm516 = vcmp.gt.s32.totalorder 0, %v515
        %v517 = vsel %vm516, 0, %v515
        %v518 = vsub.s32 32, %v517
        %v519 = vshll.u32 %v510, %v517
        %v520 = vshrl.u32 %v502, %v518
        %v521 = vor.u32 %v519, %v520
        %v522 = vsub.s32 4294967266, %v517
        %v523 = vadd.s32 %v522, 127
        %v524 = vshll.u32 %v523, 23
        %v525 = vor.u32 4788187, %v524
        %v526 = vand.u32 2147483647, %v525
        %v528 = vcvt.s32.f32 %v521
        %v529 = vmul.f32 %v528, %v526
        %v530 = vxor.u32 %v529, 2147483648
        %v531 = vsel %vm410, %v530, %v529
        %v532 = vsub.s32 4, %v508
        %v533 = vsel %vm410, %v532, %v508
        %v534 = vsel %vm409, %v392, %v531
        %v535 = vsel %vm409, 0, %v533
        %v536 = vmul.f32 %v534, %v534
        %v537 = vmul.f32 %v536, -0.001358992
        %v538 = vadd.f32 %v537, 0.041655596
        %v539 = vmul.f32 %v536, %v538
        %v540 = vadd.f32 %v539, -0.4999988
        %v541 = vmul.f32 %v536, %v540
        %v542 = vadd.f32 1.0, %v541
        %v543 = vmul.f32 %v534, %v534
        %v544 = vmul.f32 %v543, -0.00019511016
        %v545 = vadd.f32 %v544, 0.008332121
        %v546 = vmul.f32 %v543, %v545
        %v547 = vadd.f32 %v546, -0.16666654
        %v548 = vmul.f32 %v543, %v547
        %v549 = vadd.f32 %v548, 1.0
        %v550 = vmul.f32 %v549, %v534
        %vm551 = vweird.f32 %v392
        %v552 = vadd.s32 %v535, 3
        %v553 = vand.u32 %v552, 3
        %vm554 = vcmp.lt.s32.totalorder %v553, 2
        %vm555 = vcmp.eq.s32.totalorder %v553, 0
        %v556 = vxor.u32 %v550, 2147483648
        %v557 = vsel %vm555, %v542, %v556
        %vm558 = vcmp.eq.s32.totalorder %v553, 2
        %v559 = vxor.u32 %v542, 2147483648
        %v560 = vsel %vm558, %v559, %v550
        %v561 = vsel %vm554, %v557, %v560
        %v562 = vsel %vm551, nan, %v561
        %v563 = vand.u32 2147483647, %v393
        %vm564 = vcmp.le.f32.partialorder %v563, 0.7853982
        %vm565 = vcmp.lt.s32.totalorder %v393, 0
        %v566 = vand.u32 %v393, 2139095040
        %v567 = vshrl.u32 %v566, 23
        %v568 = vsub.s32 %v567, 127
        %v569 = vand.u32 2147483647, %v393
        %v570 = vand.u32 %v569, 8388607
        %v571 = vor.u32 %v570, 8388608
        %v572 = vsub.s32 0, %v571
        %v573 = vadd.s32 %v568, 1
        %vm574 = vcmp.gt.s32.totalorder %v573, 0
        %v575 = vsel %vm574, %v573, 0
        %v576 = vshrl.u32 %v575, 5
        %v577 = vand.u32 %v575, 31
        %v578 = vsub.s32 32, %v577
        %v579 = vshrl.u32 683565275, %v578
        %v580 = vshll.u32 683565275, %v577
        %v581 = vshrl.u32 2475754826, %v578
        %v582 = vor.u32 %v580, %v581
        %v583 = vshll.u32 2475754826, %v577
        %v584 = vshrl.u32 2131351028, %v578
        %v585 = vor.u32 %v583, %v584
        %v586 = vshll.u32 2131351028, %v577
        %v587 = vshrl.u32 2102212464, %v578
        %v588 = vor.u32 %v586, %v587
        %v589 = vshll.u32 2102212464, %v577
        %v590 = vshrl.u32 920167782, %v578
        %v591 = vor.u32 %v589, %v590
        %v592 = vshll.u32 920167782, %v577
        %v593 = vshrl.u32 1326507024, %v578
        %v594 = vor.u32 %v592, %v593
        %vm595 = vcmp.lt.s32.totalorder %v576, 1
        %vm596 = vcmp.lt.s32.totalorder %v576, 2
        %vm597 = vcmp.lt.s32.totalorder %v576, 3
        %vm598 = vcmp.lt.s32.totalorder %v576, 4
        %v599 = vsel %vm595, %v579, %v582
        %v600 = vsel %vm598, %v588, 2102212464
        %v601 = vsel %vm597, %v585, %v600
        %v602 = vsel %vm596, %v599, %v601
        %v603 = vsel %vm595, %v582, %v585
        %v604 = vsel %vm598, %v591, 920167782
        %v605 = vsel %vm597, %v588, %v604
        %v606 = vsel %vm596, %v603, %v605
        %v607 = vsel %vm595, %v585, %v588
        %v608 = vsel %vm598, %v594, 1326507024
        %v609 = vsel %vm597, %v591, %v608
        %v610 = vsel %vm596, %v607, %v609
        %v611 = vshll.u32 %v571, 8
        %v612 = vand.u32 %v611, 65535
        %v613 = vshrl.u32 %v611, 16
        %v614 = vand.u32 %v610, 65535
        %v615 = vshrl.u32 %v610, 16
        %v616 = vmul.u32 %v612, %v614
        %v617 = vmul.u32 %v612, %v615
        %v618 = vmul.u32 %v613, %v614
        %v619 = vmul.u32 %v613, %v615
        %v620 = vshll.u32 %v617, 16
        %v621 = vshrl.u32 %v617, 16
        %v622 = vshll.u32 %v618, 16
        %v623 = vshrl.u32 %v618, 16
        %vm624 = vc.u32 %v616, %v620
        %v625 = vsel %vm624, 1, 0
        %v626 = vadd.s32 %v616, %v620
        %v627 = vadd.s32 %v619, %v625
        %vm628 = vc.u32 %v626, %v622
        %v629 = vsel %vm628, 1, 0
        %v630 = vadd.s32 %v626, %v622
        %v631 = vadd.s32 %v627, %v629
        %v632 = vadd.s32 %v631, %v621
        %v633 = vadd.s32 %v632, %v623
        %v634 = vand.u32 %v611, 65535
        %v635 = vshrl.u32 %v611, 16
        %v636 = vand.u32 %v606, 65535
        %v637 = vshrl.u32 %v606, 16
        %v638 = vmul.u32 %v634, %v636
        %v639 = vmul.u32 %v634, %v637
        %v640 = vmul.u32 %v635, %v636
        %v641 = vmul.u32 %v635, %v637
        %v642 = vshll.u32 %v639, 16
        %v643 = vshrl.u32 %v639, 16
        %v644 = vshll.u32 %v640, 16
        %v645 = vshrl.u32 %v640, 16
        %vm646 = vc.u32 %v638, %v642
        %v647 = vsel %vm646, 1, 0
        %v648 = vadd.s32 %v638, %v642
        %v649 = vadd.s32 %v641, %v647
        %vm650 = vc.u32 %v648, %v644
        %v651 = vsel %vm650, 1, 0
        %v652 = vadd.s32 %v648, %v644
        %v653 = vadd.s32 %v649, %v651
        %v654 = vadd.s32 %v653, %v643
        %v655 = vadd.s32 %v654, %v645
        %v656 = vmul.u32 %v611, %v602
        %v657 = vadd.s32 %v633, %v652
        %vm658 = vc.u32 %v633, %v652
        %v659 = vadd.s32 %v655, 1
        %v660 = vsel %vm658, %v659, %v655
        %v661 = vadd.s32 %v656, %v660
        %v662 = vadd.s32 %v661, 536870912
        %v663 = vshrl.u32 %v662, 30
        %v664 = vshll.u32 %v663, 30
        %v665 = vsub.s32 %v661, %v664
        %vm666 = vcmp.lt.s32.totalorder %v665, 0
        %v667 = vsub.s32 0, %v665
        %v668 = vsel %vm666, %v667, %v665
        %v669 = vclz %v668
        %v670 = vsub.s32 %v669, 2
        %vm671 = vcmp.gt.s32.totalorder 0, %v670
        %v672 = vsel %vm671, 0, %v670
        %v673 = vsub.s32 32, %v672
        %v674 = vshll.u32 %v665, %v672
        %v675 = vshrl.u32 %v657, %v673
        %v676 = vor.u32 %v674, %v675
        %v677 = vsub.s32 4294967266, %v672
        %v678 = vadd.s32 %v677, 127
        %v679 = vshll.u32 %v678, 23
        %v680 = vor.u32 4788187, %v679
        %v681 = vand.u32 2147483647, %v680
        %v683 = vcvt.s32.f32 %v676
        %v684 = vmul.f32 %v683, %v681
        %v685 = vxor.u32 %v684, 2147483648
        %v686 = vsel %vm565, %v685, %v684
        %v687 = vsub.s32 4, %v663
        %v688 = vsel %vm565, %v687, %v663
        %v689 = vsel %vm564, %v393, %v686
        %v690 = vsel %vm564, 0, %v688
        %v691 = vmul.f32 %v689, %v689
        %v692 = vmul.f32 %v691, -0.001358992
        %v693 = vadd.f32 %v692, 0.041655596
        %v694 = vmul.f32 %v691, %v693
        %v695 = vadd.f32 %v694, -0.4999988
        %v696 = vmul.f32 %v691, %v695
        %v697 = vadd.f32 1.0, %v696
        %v698 = vmul.f32 %v689, %v689
        %v699 = vmul.f32 %v698, -0.00019511016
        %v700 = vadd.f32 %v699, 0.008332121
        %v701 = vmul.f32 %v698, %v700
        %v702 = vadd.f32 %v701, -0.16666654
        %v703 = vmul.f32 %v698, %v702
        %v704 = vadd.f32 %v703, 1.0
        %v705 = vmul.f32 %v704, %v689
        %vm706 = vweird.f32 %v393
        %v707 = vadd.s32 %v690, 3
        %v708 = vand.u32 %v707, 3
        %vm709 = vcmp.lt.s32.totalorder %v708, 2
        %vm710 = vcmp.eq.s32.totalorder %v708, 0
        %v711 = vxor.u32 %v705, 2147483648
        %v712 = vsel %vm710, %v697, %v711
        %vm713 = vcmp.eq.s32.totalorder %v708, 2
        %v714 = vxor.u32 %v697, 2147483648
        %v715 = vsel %vm713, %v714, %v705
        %v716 = vsel %vm709, %v712, %v715
        %v717 = vsel %vm706, nan, %v716
        %v718 = vand.u32 2147483647, %v394
        %vm719 = vcmp.le.f32.partialorder %v718, 0.7853982
        %vm720 = vcmp.lt.s32.totalorder %v394, 0
        %v721 = vand.u32 %v394, 2139095040
        %v722 = vshrl.u32 %v721, 23
        %v723 = vsub.s32 %v722, 127
        %v724 = vand.u32 2147483647, %v394
        %v725 = vand.u32 %v724, 8388607
        %v726 = vor.u32 %v725, 8388608
        %v727 = vsub.s32 0, %v726
        %v728 = vadd.s32 %v723, 1
        %vm729 = vcmp.gt.s32.totalorder %v728, 0
        %v730 = vsel %vm729, %v728, 0
        %v731 = vshrl.u32 %v730, 5
        %v732 = vand.u32 %v730, 31
        %v733 = vsub.s32 32, %v732
        %v734 = vshrl.u32 683565275, %v733
        %v735 = vshll.u32 683565275, %v732
        %v736 = vshrl.u32 2475754826, %v733
        %v737 = vor.u32 %v735, %v736
        %v738 = vshll.u32 2475754826, %v732
        %v739 = vshrl.u32 2131351028, %v733
        %v740 = vor.u32 %v738, %v739
        %v741 = vshll.u32 2131351028, %v732
        %v742 = vshrl.u32 2102212464, %v733
        %v743 = vor.u32 %v741, %v742
        %v744 = vshll.u32 2102212464, %v732
        %v745 = vshrl.u32 920167782, %v733
        %v746 = vor.u32 %v744, %v745
        %v747 = vshll.u32 920167782, %v732
        %v748 = vshrl.u32 1326507024, %v733
        %v749 = vor.u32 %v747, %v748
        %vm750 = vcmp.lt.s32.totalorder %v731, 1
        %vm751 = vcmp.lt.s32.totalorder %v731, 2
        %vm752 = vcmp.lt.s32.totalorder %v731, 3
        %vm753 = vcmp.lt.s32.totalorder %v731, 4
        %v754 = vsel %vm750, %v734, %v737
        %v755 = vsel %vm753, %v743, 2102212464
        %v756 = vsel %vm752, %v740, %v755
        %v757 = vsel %vm751, %v754, %v756
        %v758 = vsel %vm750, %v737, %v740
        %v759 = vsel %vm753, %v746, 920167782
        %v760 = vsel %vm752, %v743, %v759
        %v761 = vsel %vm751, %v758, %v760
        %v762 = vsel %vm750, %v740, %v743
        %v763 = vsel %vm753, %v749, 1326507024
        %v764 = vsel %vm752, %v746, %v763
        %v765 = vsel %vm751, %v762, %v764
        %v766 = vshll.u32 %v726, 8
        %v767 = vand.u32 %v766, 65535
        %v768 = vshrl.u32 %v766, 16
        %v769 = vand.u32 %v765, 65535
        %v770 = vshrl.u32 %v765, 16
        %v771 = vmul.u32 %v767, %v769
        %v772 = vmul.u32 %v767, %v770
        %v773 = vmul.u32 %v768, %v769
        %v774 = vmul.u32 %v768, %v770
        %v775 = vshll.u32 %v772, 16
        %v776 = vshrl.u32 %v772, 16
        %v777 = vshll.u32 %v773, 16
        %v778 = vshrl.u32 %v773, 16
        %vm779 = vc.u32 %v771, %v775
        %v780 = vsel %vm779, 1, 0
        %v781 = vadd.s32 %v771, %v775
        %v782 = vadd.s32 %v774, %v780
        %vm783 = vc.u32 %v781, %v777
        %v784 = vsel %vm783, 1, 0
        %v785 = vadd.s32 %v781, %v777
        %v786 = vadd.s32 %v782, %v784
        %v787 = vadd.s32 %v786, %v776
        %v788 = vadd.s32 %v787, %v778
        %v789 = vand.u32 %v766, 65535
        %v790 = vshrl.u32 %v766, 16
        %v791 = vand.u32 %v761, 65535
        %v792 = vshrl.u32 %v761, 16
        %v793 = vmul.u32 %v789, %v791
        %v794 = vmul.u32 %v789, %v792
        %v795 = vmul.u32 %v790, %v791
        %v796 = vmul.u32 %v790, %v792
        %v797 = vshll.u32 %v794, 16
        %v798 = vshrl.u32 %v794, 16
        %v799 = vshll.u32 %v795, 16
        %v800 = vshrl.u32 %v795, 16
        %vm801 = vc.u32 %v793, %v797
        %v802 = vsel %vm801, 1, 0
        %v803 = vadd.s32 %v793, %v797
        %v804 = vadd.s32 %v796, %v802
        %vm805 = vc.u32 %v803, %v799
        %v806 = vsel %vm805, 1, 0
        %v807 = vadd.s32 %v803, %v799
        %v808 = vadd.s32 %v804, %v806
        %v809 = vadd.s32 %v808, %v798
        %v810 = vadd.s32 %v809, %v800
        %v811 = vmul.u32 %v766, %v757
        %v812 = vadd.s32 %v788, %v807
        %vm813 = vc.u32 %v788, %v807
        %v814 = vadd.s32 %v810, 1
        %v815 = vsel %vm813, %v814, %v810
        %v816 = vadd.s32 %v811, %v815
        %v817 = vadd.s32 %v816, 536870912
        %v818 = vshrl.u32 %v817, 30
        %v819 = vshll.u32 %v818, 30
        %v820 = vsub.s32 %v816, %v819
        %vm821 = vcmp.lt.s32.totalorder %v820, 0
        %v822 = vsub.s32 0, %v820
        %v823 = vsel %vm821, %v822, %v820
        %v824 = vclz %v823
        %v825 = vsub.s32 %v824, 2
        %vm826 = vcmp.gt.s32.totalorder 0, %v825
        %v827 = vsel %vm826, 0, %v825
        %v828 = vsub.s32 32, %v827
        %v829 = vshll.u32 %v820, %v827
        %v830 = vshrl.u32 %v812, %v828
        %v831 = vor.u32 %v829, %v830
        %v832 = vsub.s32 4294967266, %v827
        %v833 = vadd.s32 %v832, 127
        %v834 = vshll.u32 %v833, 23
        %v835 = vor.u32 4788187, %v834
        %v836 = vand.u32 2147483647, %v835
        %v838 = vcvt.s32.f32 %v831
        %v839 = vmul.f32 %v838, %v836
        %v840 = vxor.u32 %v839, 2147483648
        %v841 = vsel %vm720, %v840, %v839
        %v842 = vsub.s32 4, %v818
        %v843 = vsel %vm720, %v842, %v818
        %v844 = vsel %vm719, %v394, %v841
        %v845 = vsel %vm719, 0, %v843
        %v846 = vmul.f32 %v844, %v844
        %v847 = vmul.f32 %v846, -0.001358992
        %v848 = vadd.f32 %v847, 0.041655596
        %v849 = vmul.f32 %v846, %v848
        %v850 = vadd.f32 %v849, -0.4999988
        %v851 = vmul.f32 %v846, %v850
        %v852 = vadd.f32 1.0, %v851
        %v853 = vmul.f32 %v844, %v844
        %v854 = vmul.f32 %v853, -0.00019511016
        %v855 = vadd.f32 %v854, 0.008332121
        %v856 = vmul.f32 %v853, %v855
        %v857 = vadd.f32 %v856, -0.16666654
        %v858 = vmul.f32 %v853, %v857
        %v859 = vadd.f32 %v858, 1.0
        %v860 = vmul.f32 %v859, %v844
        %vm861 = vweird.f32 %v394
        %v862 = vadd.s32 %v845, 3
        %v863 = vand.u32 %v862, 3
        %vm864 = vcmp.lt.s32.totalorder %v863, 2
        %vm865 = vcmp.eq.s32.totalorder %v863, 0
        %v866 = vxor.u32 %v860, 2147483648
        %v867 = vsel %vm865, %v852, %v866
        %vm868 = vcmp.eq.s32.totalorder %v863, 2
        %v869 = vxor.u32 %v852, 2147483648
        %v870 = vsel %vm868, %v869, %v860
        %v871 = vsel %vm864, %v867, %v870
        %v872 = vsel %vm861, nan, %v871
        %v873 = vand.u32 2147483647, %v395
        %vm874 = vcmp.le.f32.partialorder %v873, 0.7853982
        %vm875 = vcmp.lt.s32.totalorder %v395, 0
        %v876 = vand.u32 %v395, 2139095040
        %v877 = vshrl.u32 %v876, 23
        %v878 = vsub.s32 %v877, 127
        %v879 = vand.u32 2147483647, %v395
        %v880 = vand.u32 %v879, 8388607
        %v881 = vor.u32 %v880, 8388608
        %v882 = vsub.s32 0, %v881
        %v883 = vadd.s32 %v878, 1
        %vm884 = vcmp.gt.s32.totalorder %v883, 0
        %v885 = vsel %vm884, %v883, 0
        %v886 = vshrl.u32 %v885, 5
        %v887 = vand.u32 %v885, 31
        %v888 = vsub.s32 32, %v887
        %v889 = vshrl.u32 683565275, %v888
        %v890 = vshll.u32 683565275, %v887
        %v891 = vshrl.u32 2475754826, %v888
        %v892 = vor.u32 %v890, %v891
        %v893 = vshll.u32 2475754826, %v887
        %v894 = vshrl.u32 2131351028, %v888
        %v895 = vor.u32 %v893, %v894
        %v896 = vshll.u32 2131351028, %v887
        %v897 = vshrl.u32 2102212464, %v888
        %v898 = vor.u32 %v896, %v897
        %v899 = vshll.u32 2102212464, %v887
        %v900 = vshrl.u32 920167782, %v888
        %v901 = vor.u32 %v899, %v900
        %v902 = vshll.u32 920167782, %v887
        %v903 = vshrl.u32 1326507024, %v888
        %v904 = vor.u32 %v902, %v903
        %vm905 = vcmp.lt.s32.totalorder %v886, 1
        %vm906 = vcmp.lt.s32.totalorder %v886, 2
        %vm907 = vcmp.lt.s32.totalorder %v886, 3
        %vm908 = vcmp.lt.s32.totalorder %v886, 4
        %v909 = vsel %vm905, %v889, %v892
        %v910 = vsel %vm908, %v898, 2102212464
        %v911 = vsel %vm907, %v895, %v910
        %v912 = vsel %vm906, %v909, %v911
        %v913 = vsel %vm905, %v892, %v895
        %v914 = vsel %vm908, %v901, 920167782
        %v915 = vsel %vm907, %v898, %v914
        %v916 = vsel %vm906, %v913, %v915
        %v917 = vsel %vm905, %v895, %v898
        %v918 = vsel %vm908, %v904, 1326507024
        %v919 = vsel %vm907, %v901, %v918
        %v920 = vsel %vm906, %v917, %v919
        %v921 = vshll.u32 %v881, 8
        %v922 = vand.u32 %v921, 65535
        %v923 = vshrl.u32 %v921, 16
        %v924 = vand.u32 %v920, 65535
        %v925 = vshrl.u32 %v920, 16
        %v926 = vmul.u32 %v922, %v924
        %v927 = vmul.u32 %v922, %v925
        %v928 = vmul.u32 %v923, %v924
        %v929 = vmul.u32 %v923, %v925
        %v930 = vshll.u32 %v927, 16
        %v931 = vshrl.u32 %v927, 16
        %v932 = vshll.u32 %v928, 16
        %v933 = vshrl.u32 %v928, 16
        %vm934 = vc.u32 %v926, %v930
        %v935 = vsel %vm934, 1, 0
        %v936 = vadd.s32 %v926, %v930
        %v937 = vadd.s32 %v929, %v935
        %vm938 = vc.u32 %v936, %v932
        %v939 = vsel %vm938, 1, 0
        %v940 = vadd.s32 %v936, %v932
        %v941 = vadd.s32 %v937, %v939
        %v942 = vadd.s32 %v941, %v931
        %v943 = vadd.s32 %v942, %v933
        %v944 = vand.u32 %v921, 65535
        %v945 = vshrl.u32 %v921, 16
        %v946 = vand.u32 %v916, 65535
        %v947 = vshrl.u32 %v916, 16
        %v948 = vmul.u32 %v944, %v946
        %v949 = vmul.u32 %v944, %v947
        %v950 = vmul.u32 %v945, %v946
        %v951 = vmul.u32 %v945, %v947
        %v952 = vshll.u32 %v949, 16
        %v953 = vshrl.u32 %v949, 16
        %v954 = vshll.u32 %v950, 16
        %v955 = vshrl.u32 %v950, 16
        %vm956 = vc.u32 %v948, %v952
        %v957 = vsel %vm956, 1, 0
        %v958 = vadd.s32 %v948, %v952
        %v959 = vadd.s32 %v951, %v957
        %vm960 = vc.u32 %v958, %v954
        %v961 = vsel %vm960, 1, 0
        %v962 = vadd.s32 %v958, %v954
        %v963 = vadd.s32 %v959, %v961
        %v964 = vadd.s32 %v963, %v953
        %v965 = vadd.s32 %v964, %v955
        %v966 = vmul.u32 %v921, %v912
        %v967 = vadd.s32 %v943, %v962
        %vm968 = vc.u32 %v943, %v962
        %v969 = vadd.s32 %v965, 1
        %v970 = vsel %vm968, %v969, %v965
        %v971 = vadd.s32 %v966, %v970
        %v972 = vadd.s32 %v971, 536870912
        %v973 = vshrl.u32 %v972, 30
        %v974 = vshll.u32 %v973, 30
        %v975 = vsub.s32 %v971, %v974
        %vm976 = vcmp.lt.s32.totalorder %v975, 0
        %v977 = vsub.s32 0, %v975
        %v978 = vsel %vm976, %v977, %v975
        %v979 = vclz %v978
        %v980 = vsub.s32 %v979, 2
        %vm981 = vcmp.gt.s32.totalorder 0, %v980
        %v982 = vsel %vm981, 0, %v980
        %v983 = vsub.s32 32, %v982
        %v984 = vshll.u32 %v975, %v982
        %v985 = vshrl.u32 %v967, %v983
        %v986 = vor.u32 %v984, %v985
        %v987 = vsub.s32 4294967266, %v982
        %v988 = vadd.s32 %v987, 127
        %v989 = vshll.u32 %v988, 23
        %v990 = vor.u32 4788187, %v989
        %v991 = vand.u32 2147483647, %v990
        %v993 = vcvt.s32.f32 %v986
        %v994 = vmul.f32 %v993, %v991
        %v995 = vxor.u32 %v994, 2147483648
        %v996 = vsel %vm875, %v995, %v994
        %v997 = vsub.s32 4, %v973
        %v998 = vsel %vm875, %v997, %v973
        %v999 = vsel %vm874, %v395, %v996
        %v1000 = vsel %vm874, 0, %v998
        %v1001 = vmul.f32 %v999, %v999
        %v1002 = vmul.f32 %v1001, -0.001358992
        %v1003 = vadd.f32 %v1002, 0.041655596
        %v1004 = vmul.f32 %v1001, %v1003
        %v1005 = vadd.f32 %v1004, -0.4999988
        %v1006 = vmul.f32 %v1001, %v1005
        %v1007 = vadd.f32 1.0, %v1006
        %v1008 = vmul.f32 %v999, %v999
        %v1009 = vmul.f32 %v1008, -0.00019511016
        %v1010 = vadd.f32 %v1009, 0.008332121
        %v1011 = vmul.f32 %v1008, %v1010
        %v1012 = vadd.f32 %v1011, -0.16666654
        %v1013 = vmul.f32 %v1008, %v1012
        %v1014 = vadd.f32 %v1013, 1.0
        %v1015 = vmul.f32 %v1014, %v999
        %vm1016 = vweird.f32 %v395
        %v1017 = vadd.s32 %v1000, 3
        %v1018 = vand.u32 %v1017, 3
        %vm1019 = vcmp.lt.s32.totalorder %v1018, 2
        %vm1020 = vcmp.eq.s32.totalorder %v1018, 0
        %v1021 = vxor.u32 %v1015, 2147483648
        %v1022 = vsel %vm1020, %v1007, %v1021
        %vm1023 = vcmp.eq.s32.totalorder %v1018, 2
        %v1024 = vxor.u32 %v1007, 2147483648
        %v1025 = vsel %vm1023, %v1024, %v1015
        %v1026 = vsel %vm1019, %v1022, %v1025
        %v1027 = vsel %vm1016, nan, %v1026
        %v1028 = vand.u32 2147483647, %v396
        %vm1029 = vcmp.le.f32.partialorder %v1028, 0.7853982
        %vm1030 = vcmp.lt.s32.totalorder %v396, 0
        %v1031 = vand.u32 %v396, 2139095040
        %v1032 = vshrl.u32 %v1031, 23
        %v1033 = vsub.s32 %v1032, 127
        %v1034 = vand.u32 2147483647, %v396
        %v1035 = vand.u32 %v1034, 8388607
        %v1036 = vor.u32 %v1035, 8388608
        %v1037 = vsub.s32 0, %v1036
        %v1038 = vadd.s32 %v1033, 1
        %vm1039 = vcmp.gt.s32.totalorder %v1038, 0
        %v1040 = vsel %vm1039, %v1038, 0
        %v1041 = vshrl.u32 %v1040, 5
        %v1042 = vand.u32 %v1040, 31
        %v1043 = vsub.s32 32, %v1042
        %v1044 = vshrl.u32 683565275, %v1043
        %v1045 = vshll.u32 683565275, %v1042
        %v1046 = vshrl.u32 2475754826, %v1043
        %v1047 = vor.u32 %v1045, %v1046
        %v1048 = vshll.u32 2475754826, %v1042
        %v1049 = vshrl.u32 2131351028, %v1043
        %v1050 = vor.u32 %v1048, %v1049
        %v1051 = vshll.u32 2131351028, %v1042
        %v1052 = vshrl.u32 2102212464, %v1043
        %v1053 = vor.u32 %v1051, %v1052
        %v1054 = vshll.u32 2102212464, %v1042
        %v1055 = vshrl.u32 920167782, %v1043
        %v1056 = vor.u32 %v1054, %v1055
        %v1057 = vshll.u32 920167782, %v1042
        %v1058 = vshrl.u32 1326507024, %v1043
        %v1059 = vor.u32 %v1057, %v1058
        %vm1060 = vcmp.lt.s32.totalorder %v1041, 1
        %vm1061 = vcmp.lt.s32.totalorder %v1041, 2
        %vm1062 = vcmp.lt.s32.totalorder %v1041, 3
        %vm1063 = vcmp.lt.s32.totalorder %v1041, 4
        %v1064 = vsel %vm1060, %v1044, %v1047
        %v1065 = vsel %vm1063, %v1053, 2102212464
        %v1066 = vsel %vm1062, %v1050, %v1065
        %v1067 = vsel %vm1061, %v1064, %v1066
        %v1068 = vsel %vm1060, %v1047, %v1050
        %v1069 = vsel %vm1063, %v1056, 920167782
        %v1070 = vsel %vm1062, %v1053, %v1069
        %v1071 = vsel %vm1061, %v1068, %v1070
        %v1072 = vsel %vm1060, %v1050, %v1053
        %v1073 = vsel %vm1063, %v1059, 1326507024
        %v1074 = vsel %vm1062, %v1056, %v1073
        %v1075 = vsel %vm1061, %v1072, %v1074
        %v1076 = vshll.u32 %v1036, 8
        %v1077 = vand.u32 %v1076, 65535
        %v1078 = vshrl.u32 %v1076, 16
        %v1079 = vand.u32 %v1075, 65535
        %v1080 = vshrl.u32 %v1075, 16
        %v1081 = vmul.u32 %v1077, %v1079
        %v1082 = vmul.u32 %v1077, %v1080
        %v1083 = vmul.u32 %v1078, %v1079
        %v1084 = vmul.u32 %v1078, %v1080
        %v1085 = vshll.u32 %v1082, 16
        %v1086 = vshrl.u32 %v1082, 16
        %v1087 = vshll.u32 %v1083, 16
        %v1088 = vshrl.u32 %v1083, 16
        %vm1089 = vc.u32 %v1081, %v1085
        %v1090 = vsel %vm1089, 1, 0
        %v1091 = vadd.s32 %v1081, %v1085
        %v1092 = vadd.s32 %v1084, %v1090
        %vm1093 = vc.u32 %v1091, %v1087
        %v1094 = vsel %vm1093, 1, 0
        %v1095 = vadd.s32 %v1091, %v1087
        %v1096 = vadd.s32 %v1092, %v1094
        %v1097 = vadd.s32 %v1096, %v1086
        %v1098 = vadd.s32 %v1097, %v1088
        %v1099 = vand.u32 %v1076, 65535
        %v1100 = vshrl.u32 %v1076, 16
        %v1101 = vand.u32 %v1071, 65535
        %v1102 = vshrl.u32 %v1071, 16
        %v1103 = vmul.u32 %v1099, %v1101
        %v1104 = vmul.u32 %v1099, %v1102
        %v1105 = vmul.u32 %v1100, %v1101
        %v1106 = vmul.u32 %v1100, %v1102
        %v1107 = vshll.u32 %v1104, 16
        %v1108 = vshrl.u32 %v1104, 16
        %v1109 = vshll.u32 %v1105, 16
        %v1110 = vshrl.u32 %v1105, 16
        %vm1111 = vc.u32 %v1103, %v1107
        %v1112 = vsel %vm1111, 1, 0
        %v1113 = vadd.s32 %v1103, %v1107
        %v1114 = vadd.s32 %v1106, %v1112
        %vm1115 = vc.u32 %v1113, %v1109
        %v1116 = vsel %vm1115, 1, 0
        %v1117 = vadd.s32 %v1113, %v1109
        %v1118 = vadd.s32 %v1114, %v1116
        %v1119 = vadd.s32 %v1118, %v1108
        %v1120 = vadd.s32 %v1119, %v1110
        %v1121 = vmul.u32 %v1076, %v1067
        %v1122 = vadd.s32 %v1098, %v1117
        %vm1123 = vc.u32 %v1098, %v1117
        %v1124 = vadd.s32 %v1120, 1
        %v1125 = vsel %vm1123, %v1124, %v1120
        %v1126 = vadd.s32 %v1121, %v1125
        %v1127 = vadd.s32 %v1126, 536870912
        %v1128 = vshrl.u32 %v1127, 30
        %v1129 = vshll.u32 %v1128, 30
        %v1130 = vsub.s32 %v1126, %v1129
        %vm1131 = vcmp.lt.s32.totalorder %v1130, 0
        %v1132 = vsub.s32 0, %v1130
        %v1133 = vsel %vm1131, %v1132, %v1130
        %v1134 = vclz %v1133
        %v1135 = vsub.s32 %v1134, 2
        %vm1136 = vcmp.gt.s32.totalorder 0, %v1135
        %v1137 = vsel %vm1136, 0, %v1135
        %v1138 = vsub.s32 32, %v1137
        %v1139 = vshll.u32 %v1130, %v1137
        %v1140 = vshrl.u32 %v1122, %v1138
        %v1141 = vor.u32 %v1139, %v1140
        %v1142 = vsub.s32 4294967266, %v1137
        %v1143 = vadd.s32 %v1142, 127
        %v1144 = vshll.u32 %v1143, 23
        %v1145 = vor.u32 4788187, %v1144
        %v1146 = vand.u32 2147483647, %v1145
        %v1148 = vcvt.s32.f32 %v1141
        %v1149 = vmul.f32 %v1148, %v1146
        %v1150 = vxor.u32 %v1149, 2147483648
        %v1151 = vsel %vm1030, %v1150, %v1149
        %v1152 = vsub.s32 4, %v1128
        %v1153 = vsel %vm1030, %v1152, %v1128
        %v1154 = vsel %vm1029, %v396, %v1151
        %v1155 = vsel %vm1029, 0, %v1153
        %v1156 = vmul.f32 %v1154, %v1154
        %v1157 = vmul.f32 %v1156, -0.001358992
        %v1158 = vadd.f32 %v1157, 0.041655596
        %v1159 = vmul.f32 %v1156, %v1158
        %v1160 = vadd.f32 %v1159, -0.4999988
        %v1161 = vmul.f32 %v1156, %v1160
        %v1162 = vadd.f32 1.0, %v1161
        %v1163 = vmul.f32 %v1154, %v1154
        %v1164 = vmul.f32 %v1163, -0.00019511016
        %v1165 = vadd.f32 %v1164, 0.008332121
        %v1166 = vmul.f32 %v1163, %v1165
        %v1167 = vadd.f32 %v1166, -0.16666654
        %v1168 = vmul.f32 %v1163, %v1167
        %v1169 = vadd.f32 %v1168, 1.0
        %v1170 = vmul.f32 %v1169, %v1154
        %vm1171 = vweird.f32 %v396
        %v1172 = vadd.s32 %v1155, 3
        %v1173 = vand.u32 %v1172, 3
        %vm1174 = vcmp.lt.s32.totalorder %v1173, 2
        %vm1175 = vcmp.eq.s32.totalorder %v1173, 0
        %v1176 = vxor.u32 %v1170, 2147483648
        %v1177 = vsel %vm1175, %v1162, %v1176
        %vm1178 = vcmp.eq.s32.totalorder %v1173, 2
        %v1179 = vxor.u32 %v1162, 2147483648
        %v1180 = vsel %vm1178, %v1179, %v1170
        %v1181 = vsel %vm1174, %v1177, %v1180
        %v1182 = vsel %vm1171, nan, %v1181
        %v1183 = vand.u32 2147483647, %v397
        %vm1184 = vcmp.le.f32.partialorder %v1183, 0.7853982
        %vm1185 = vcmp.lt.s32.totalorder %v397, 0
        %v1186 = vand.u32 %v397, 2139095040
        %v1187 = vshrl.u32 %v1186, 23
        %v1188 = vsub.s32 %v1187, 127
        %v1189 = vand.u32 2147483647, %v397
        %v1190 = vand.u32 %v1189, 8388607
        %v1191 = vor.u32 %v1190, 8388608
        %v1192 = vsub.s32 0, %v1191
        %v1193 = vadd.s32 %v1188, 1
        %vm1194 = vcmp.gt.s32.totalorder %v1193, 0
        %v1195 = vsel %vm1194, %v1193, 0
        %v1196 = vshrl.u32 %v1195, 5
        %v1197 = vand.u32 %v1195, 31
        %v1198 = vsub.s32 32, %v1197
        %v1199 = vshrl.u32 683565275, %v1198
        %v1200 = vshll.u32 683565275, %v1197
        %v1201 = vshrl.u32 2475754826, %v1198
        %v1202 = vor.u32 %v1200, %v1201
        %v1203 = vshll.u32 2475754826, %v1197
        %v1204 = vshrl.u32 2131351028, %v1198
        %v1205 = vor.u32 %v1203, %v1204
        %v1206 = vshll.u32 2131351028, %v1197
        %v1207 = vshrl.u32 2102212464, %v1198
        %v1208 = vor.u32 %v1206, %v1207
        %v1209 = vshll.u32 2102212464, %v1197
        %v1210 = vshrl.u32 920167782, %v1198
        %v1211 = vor.u32 %v1209, %v1210
        %v1212 = vshll.u32 920167782, %v1197
        %v1213 = vshrl.u32 1326507024, %v1198
        %v1214 = vor.u32 %v1212, %v1213
        %vm1215 = vcmp.lt.s32.totalorder %v1196, 1
        %vm1216 = vcmp.lt.s32.totalorder %v1196, 2
        %vm1217 = vcmp.lt.s32.totalorder %v1196, 3
        %vm1218 = vcmp.lt.s32.totalorder %v1196, 4
        %v1219 = vsel %vm1215, %v1199, %v1202
        %v1220 = vsel %vm1218, %v1208, 2102212464
        %v1221 = vsel %vm1217, %v1205, %v1220
        %v1222 = vsel %vm1216, %v1219, %v1221
        %v1223 = vsel %vm1215, %v1202, %v1205
        %v1224 = vsel %vm1218, %v1211, 920167782
        %v1225 = vsel %vm1217, %v1208, %v1224
        %v1226 = vsel %vm1216, %v1223, %v1225
        %v1227 = vsel %vm1215, %v1205, %v1208
        %v1228 = vsel %vm1218, %v1214, 1326507024
        %v1229 = vsel %vm1217, %v1211, %v1228
        %v1230 = vsel %vm1216, %v1227, %v1229
        %v1231 = vshll.u32 %v1191, 8
        %v1232 = vand.u32 %v1231, 65535
        %v1233 = vshrl.u32 %v1231, 16
        %v1234 = vand.u32 %v1230, 65535
        %v1235 = vshrl.u32 %v1230, 16
        %v1236 = vmul.u32 %v1232, %v1234
        %v1237 = vmul.u32 %v1232, %v1235
        %v1238 = vmul.u32 %v1233, %v1234
        %v1239 = vmul.u32 %v1233, %v1235
        %v1240 = vshll.u32 %v1237, 16
        %v1241 = vshrl.u32 %v1237, 16
        %v1242 = vshll.u32 %v1238, 16
        %v1243 = vshrl.u32 %v1238, 16
        %vm1244 = vc.u32 %v1236, %v1240
        %v1245 = vsel %vm1244, 1, 0
        %v1246 = vadd.s32 %v1236, %v1240
        %v1247 = vadd.s32 %v1239, %v1245
        %vm1248 = vc.u32 %v1246, %v1242
        %v1249 = vsel %vm1248, 1, 0
        %v1250 = vadd.s32 %v1246, %v1242
        %v1251 = vadd.s32 %v1247, %v1249
        %v1252 = vadd.s32 %v1251, %v1241
        %v1253 = vadd.s32 %v1252, %v1243
        %v1254 = vand.u32 %v1231, 65535
        %v1255 = vshrl.u32 %v1231, 16
        %v1256 = vand.u32 %v1226, 65535
        %v1257 = vshrl.u32 %v1226, 16
        %v1258 = vmul.u32 %v1254, %v1256
        %v1259 = vmul.u32 %v1254, %v1257
        %v1260 = vmul.u32 %v1255, %v1256
        %v1261 = vmul.u32 %v1255, %v1257
        %v1262 = vshll.u32 %v1259, 16
        %v1263 = vshrl.u32 %v1259, 16
        %v1264 = vshll.u32 %v1260, 16
        %v1265 = vshrl.u32 %v1260, 16
        %vm1266 = vc.u32 %v1258, %v1262
        %v1267 = vsel %vm1266, 1, 0
        %v1268 = vadd.s32 %v1258, %v1262
        %v1269 = vadd.s32 %v1261, %v1267
        %vm1270 = vc.u32 %v1268, %v1264
        %v1271 = vsel %vm1270, 1, 0
        %v1272 = vadd.s32 %v1268, %v1264
        %v1273 = vadd.s32 %v1269, %v1271
        %v1274 = vadd.s32 %v1273, %v1263
        %v1275 = vadd.s32 %v1274, %v1265
        %v1276 = vmul.u32 %v1231, %v1222
        %v1277 = vadd.s32 %v1253, %v1272
        %vm1278 = vc.u32 %v1253, %v1272
        %v1279 = vadd.s32 %v1275, 1
        %v1280 = vsel %vm1278, %v1279, %v1275
        %v1281 = vadd.s32 %v1276, %v1280
        %v1282 = vadd.s32 %v1281, 536870912
        %v1283 = vshrl.u32 %v1282, 30
        %v1284 = vshll.u32 %v1283, 30
        %v1285 = vsub.s32 %v1281, %v1284
        %vm1286 = vcmp.lt.s32.totalorder %v1285, 0
        %v1287 = vsub.s32 0, %v1285
        %v1288 = vsel %vm1286, %v1287, %v1285
        %v1289 = vclz %v1288
        %v1290 = vsub.s32 %v1289, 2
        %vm1291 = vcmp.gt.s32.totalorder 0, %v1290
        %v1292 = vsel %vm1291, 0, %v1290
        %v1293 = vsub.s32 32, %v1292
        %v1294 = vshll.u32 %v1285, %v1292
        %v1295 = vshrl.u32 %v1277, %v1293
        %v1296 = vor.u32 %v1294, %v1295
        %v1297 = vsub.s32 4294967266, %v1292
        %v1298 = vadd.s32 %v1297, 127
        %v1299 = vshll.u32 %v1298, 23
        %v1300 = vor.u32 4788187, %v1299
        %v1301 = vand.u32 2147483647, %v1300
        %v1303 = vcvt.s32.f32 %v1296
        %v1304 = vmul.f32 %v1303, %v1301
        %v1305 = vxor.u32 %v1304, 2147483648
        %v1306 = vsel %vm1185, %v1305, %v1304
        %v1307 = vsub.s32 4, %v1283
        %v1308 = vsel %vm1185, %v1307, %v1283
        %v1309 = vsel %vm1184, %v397, %v1306
        %v1310 = vsel %vm1184, 0, %v1308
        %v1311 = vmul.f32 %v1309, %v1309
        %v1312 = vmul.f32 %v1311, -0.001358992
        %v1313 = vadd.f32 %v1312, 0.041655596
        %v1314 = vmul.f32 %v1311, %v1313
        %v1315 = vadd.f32 %v1314, -0.4999988
        %v1316 = vmul.f32 %v1311, %v1315
        %v1317 = vadd.f32 1.0, %v1316
        %v1318 = vmul.f32 %v1309, %v1309
        %v1319 = vmul.f32 %v1318, -0.00019511016
        %v1320 = vadd.f32 %v1319, 0.008332121
        %v1321 = vmul.f32 %v1318, %v1320
        %v1322 = vadd.f32 %v1321, -0.16666654
        %v1323 = vmul.f32 %v1318, %v1322
        %v1324 = vadd.f32 %v1323, 1.0
        %v1325 = vmul.f32 %v1324, %v1309
        %vm1326 = vweird.f32 %v397
        %v1327 = vadd.s32 %v1310, 3
        %v1328 = vand.u32 %v1327, 3
        %vm1329 = vcmp.lt.s32.totalorder %v1328, 2
        %vm1330 = vcmp.eq.s32.totalorder %v1328, 0
        %v1331 = vxor.u32 %v1325, 2147483648
        %v1332 = vsel %vm1330, %v1317, %v1331
        %vm1333 = vcmp.eq.s32.totalorder %v1328, 2
        %v1334 = vxor.u32 %v1317, 2147483648
        %v1335 = vsel %vm1333, %v1334, %v1325
        %v1336 = vsel %vm1329, %v1332, %v1335
        %v1337 = vsel %vm1326, nan, %v1336
        %v1338 = vand.u32 2147483647, %v398
        %vm1339 = vcmp.le.f32.partialorder %v1338, 0.7853982
        %vm1340 = vcmp.lt.s32.totalorder %v398, 0
        %v1341 = vand.u32 %v398, 2139095040
        %v1342 = vshrl.u32 %v1341, 23
        %v1343 = vsub.s32 %v1342, 127
        %v1344 = vand.u32 2147483647, %v398
        %v1345 = vand.u32 %v1344, 8388607
        %v1346 = vor.u32 %v1345, 8388608
        %v1347 = vsub.s32 0, %v1346
        %v1348 = vadd.s32 %v1343, 1
        %vm1349 = vcmp.gt.s32.totalorder %v1348, 0
        %v1350 = vsel %vm1349, %v1348, 0
        %v1351 = vshrl.u32 %v1350, 5
        %v1352 = vand.u32 %v1350, 31
        %v1353 = vsub.s32 32, %v1352
        %v1354 = vshrl.u32 683565275, %v1353
        %v1355 = vshll.u32 683565275, %v1352
        %v1356 = vshrl.u32 2475754826, %v1353
        %v1357 = vor.u32 %v1355, %v1356
        %v1358 = vshll.u32 2475754826, %v1352
        %v1359 = vshrl.u32 2131351028, %v1353
        %v1360 = vor.u32 %v1358, %v1359
        %v1361 = vshll.u32 2131351028, %v1352
        %v1362 = vshrl.u32 2102212464, %v1353
        %v1363 = vor.u32 %v1361, %v1362
        %v1364 = vshll.u32 2102212464, %v1352
        %v1365 = vshrl.u32 920167782, %v1353
        %v1366 = vor.u32 %v1364, %v1365
        %v1367 = vshll.u32 920167782, %v1352
        %v1368 = vshrl.u32 1326507024, %v1353
        %v1369 = vor.u32 %v1367, %v1368
        %vm1370 = vcmp.lt.s32.totalorder %v1351, 1
        %vm1371 = vcmp.lt.s32.totalorder %v1351, 2
        %vm1372 = vcmp.lt.s32.totalorder %v1351, 3
        %vm1373 = vcmp.lt.s32.totalorder %v1351, 4
        %v1374 = vsel %vm1370, %v1354, %v1357
        %v1375 = vsel %vm1373, %v1363, 2102212464
        %v1376 = vsel %vm1372, %v1360, %v1375
        %v1377 = vsel %vm1371, %v1374, %v1376
        %v1378 = vsel %vm1370, %v1357, %v1360
        %v1379 = vsel %vm1373, %v1366, 920167782
        %v1380 = vsel %vm1372, %v1363, %v1379
        %v1381 = vsel %vm1371, %v1378, %v1380
        %v1382 = vsel %vm1370, %v1360, %v1363
        %v1383 = vsel %vm1373, %v1369, 1326507024
        %v1384 = vsel %vm1372, %v1366, %v1383
        %v1385 = vsel %vm1371, %v1382, %v1384
        %v1386 = vshll.u32 %v1346, 8
        %v1387 = vand.u32 %v1386, 65535
        %v1388 = vshrl.u32 %v1386, 16
        %v1389 = vand.u32 %v1385, 65535
        %v1390 = vshrl.u32 %v1385, 16
        %v1391 = vmul.u32 %v1387, %v1389
        %v1392 = vmul.u32 %v1387, %v1390
        %v1393 = vmul.u32 %v1388, %v1389
        %v1394 = vmul.u32 %v1388, %v1390
        %v1395 = vshll.u32 %v1392, 16
        %v1396 = vshrl.u32 %v1392, 16
        %v1397 = vshll.u32 %v1393, 16
        %v1398 = vshrl.u32 %v1393, 16
        %vm1399 = vc.u32 %v1391, %v1395
        %v1400 = vsel %vm1399, 1, 0
        %v1401 = vadd.s32 %v1391, %v1395
        %v1402 = vadd.s32 %v1394, %v1400
        %vm1403 = vc.u32 %v1401, %v1397
        %v1404 = vsel %vm1403, 1, 0
        %v1405 = vadd.s32 %v1401, %v1397
        %v1406 = vadd.s32 %v1402, %v1404
        %v1407 = vadd.s32 %v1406, %v1396
        %v1408 = vadd.s32 %v1407, %v1398
        %v1409 = vand.u32 %v1386, 65535
        %v1410 = vshrl.u32 %v1386, 16
        %v1411 = vand.u32 %v1381, 65535
        %v1412 = vshrl.u32 %v1381, 16
        %v1413 = vmul.u32 %v1409, %v1411
        %v1414 = vmul.u32 %v1409, %v1412
        %v1415 = vmul.u32 %v1410, %v1411
        %v1416 = vmul.u32 %v1410, %v1412
        %v1417 = vshll.u32 %v1414, 16
        %v1418 = vshrl.u32 %v1414, 16
        %v1419 = vshll.u32 %v1415, 16
        %v1420 = vshrl.u32 %v1415, 16
        %vm1421 = vc.u32 %v1413, %v1417
        %v1422 = vsel %vm1421, 1, 0
        %v1423 = vadd.s32 %v1413, %v1417
        %v1424 = vadd.s32 %v1416, %v1422
        %vm1425 = vc.u32 %v1423, %v1419
        %v1426 = vsel %vm1425, 1, 0
        %v1427 = vadd.s32 %v1423, %v1419
        %v1428 = vadd.s32 %v1424, %v1426
        %v1429 = vadd.s32 %v1428, %v1418
        %v1430 = vadd.s32 %v1429, %v1420
        %v1431 = vmul.u32 %v1386, %v1377
        %v1432 = vadd.s32 %v1408, %v1427
        %vm1433 = vc.u32 %v1408, %v1427
        %v1434 = vadd.s32 %v1430, 1
        %v1435 = vsel %vm1433, %v1434, %v1430
        %v1436 = vadd.s32 %v1431, %v1435
        %v1437 = vadd.s32 %v1436, 536870912
        %v1438 = vshrl.u32 %v1437, 30
        %v1439 = vshll.u32 %v1438, 30
        %v1440 = vsub.s32 %v1436, %v1439
        %vm1441 = vcmp.lt.s32.totalorder %v1440, 0
        %v1442 = vsub.s32 0, %v1440
        %v1443 = vsel %vm1441, %v1442, %v1440
        %v1444 = vclz %v1443
        %v1445 = vsub.s32 %v1444, 2
        %vm1446 = vcmp.gt.s32.totalorder 0, %v1445
        %v1447 = vsel %vm1446, 0, %v1445
        %v1448 = vsub.s32 32, %v1447
        %v1449 = vshll.u32 %v1440, %v1447
        %v1450 = vshrl.u32 %v1432, %v1448
        %v1451 = vor.u32 %v1449, %v1450
        %v1452 = vsub.s32 4294967266, %v1447
        %v1453 = vadd.s32 %v1452, 127
        %v1454 = vshll.u32 %v1453, 23
        %v1455 = vor.u32 4788187, %v1454
        %v1456 = vand.u32 2147483647, %v1455
        %v1458 = vcvt.s32.f32 %v1451
        %v1459 = vmul.f32 %v1458, %v1456
        %v1460 = vxor.u32 %v1459, 2147483648
        %v1461 = vsel %vm1340, %v1460, %v1459
        %v1462 = vsub.s32 4, %v1438
        %v1463 = vsel %vm1340, %v1462, %v1438
        %v1464 = vsel %vm1339, %v398, %v1461
        %v1465 = vsel %vm1339, 0, %v1463
        %v1466 = vmul.f32 %v1464, %v1464
        %v1467 = vmul.f32 %v1466, -0.001358992
        %v1468 = vadd.f32 %v1467, 0.041655596
        %v1469 = vmul.f32 %v1466, %v1468
        %v1470 = vadd.f32 %v1469, -0.4999988
        %v1471 = vmul.f32 %v1466, %v1470
        %v1472 = vadd.f32 1.0, %v1471
        %v1473 = vmul.f32 %v1464, %v1464
        %v1474 = vmul.f32 %v1473, -0.00019511016
        %v1475 = vadd.f32 %v1474, 0.008332121
        %v1476 = vmul.f32 %v1473, %v1475
        %v1477 = vadd.f32 %v1476, -0.16666654
        %v1478 = vmul.f32 %v1473, %v1477
        %v1479 = vadd.f32 %v1478, 1.0
        %v1480 = vmul.f32 %v1479, %v1464
        %vm1481 = vweird.f32 %v398
        %v1482 = vadd.s32 %v1465, 3
        %v1483 = vand.u32 %v1482, 3
        %vm1484 = vcmp.lt.s32.totalorder %v1483, 2
        %vm1485 = vcmp.eq.s32.totalorder %v1483, 0
        %v1486 = vxor.u32 %v1480, 2147483648
        %v1487 = vsel %vm1485, %v1472, %v1486
        %vm1488 = vcmp.eq.s32.totalorder %v1483, 2
        %v1489 = vxor.u32 %v1472, 2147483648
        %v1490 = vsel %vm1488, %v1489, %v1480
        %v1491 = vsel %vm1484, %v1487, %v1490
        %v1492 = vsel %vm1481, nan, %v1491
        %v1493 = vand.u32 2147483647, %v399
        %vm1494 = vcmp.le.f32.partialorder %v1493, 0.7853982
        %vm1495 = vcmp.lt.s32.totalorder %v399, 0
        %v1496 = vand.u32 %v399, 2139095040
        %v1497 = vshrl.u32 %v1496, 23
        %v1498 = vsub.s32 %v1497, 127
        %v1499 = vand.u32 2147483647, %v399
        %v1500 = vand.u32 %v1499, 8388607
        %v1501 = vor.u32 %v1500, 8388608
        %v1502 = vsub.s32 0, %v1501
        %v1503 = vadd.s32 %v1498, 1
        %vm1504 = vcmp.gt.s32.totalorder %v1503, 0
        %v1505 = vsel %vm1504, %v1503, 0
        %v1506 = vshrl.u32 %v1505, 5
        %v1507 = vand.u32 %v1505, 31
        %v1508 = vsub.s32 32, %v1507
        %v1509 = vshrl.u32 683565275, %v1508
        %v1510 = vshll.u32 683565275, %v1507
        %v1511 = vshrl.u32 2475754826, %v1508
        %v1512 = vor.u32 %v1510, %v1511
        %v1513 = vshll.u32 2475754826, %v1507
        %v1514 = vshrl.u32 2131351028, %v1508
        %v1515 = vor.u32 %v1513, %v1514
        %v1516 = vshll.u32 2131351028, %v1507
        %v1517 = vshrl.u32 2102212464, %v1508
        %v1518 = vor.u32 %v1516, %v1517
        %v1519 = vshll.u32 2102212464, %v1507
        %v1520 = vshrl.u32 920167782, %v1508
        %v1521 = vor.u32 %v1519, %v1520
        %v1522 = vshll.u32 920167782, %v1507
        %v1523 = vshrl.u32 1326507024, %v1508
        %v1524 = vor.u32 %v1522, %v1523
        %vm1525 = vcmp.lt.s32.totalorder %v1506, 1
        %vm1526 = vcmp.lt.s32.totalorder %v1506, 2
        %vm1527 = vcmp.lt.s32.totalorder %v1506, 3
        %vm1528 = vcmp.lt.s32.totalorder %v1506, 4
        %v1529 = vsel %vm1525, %v1509, %v1512
        %v1530 = vsel %vm1528, %v1518, 2102212464
        %v1531 = vsel %vm1527, %v1515, %v1530
        %v1532 = vsel %vm1526, %v1529, %v1531
        %v1533 = vsel %vm1525, %v1512, %v1515
        %v1534 = vsel %vm1528, %v1521, 920167782
        %v1535 = vsel %vm1527, %v1518, %v1534
        %v1536 = vsel %vm1526, %v1533, %v1535
        %v1537 = vsel %vm1525, %v1515, %v1518
        %v1538 = vsel %vm1528, %v1524, 1326507024
        %v1539 = vsel %vm1527, %v1521, %v1538
        %v1540 = vsel %vm1526, %v1537, %v1539
        %v1541 = vshll.u32 %v1501, 8
        %v1542 = vand.u32 %v1541, 65535
        %v1543 = vshrl.u32 %v1541, 16
        %v1544 = vand.u32 %v1540, 65535
        %v1545 = vshrl.u32 %v1540, 16
        %v1546 = vmul.u32 %v1542, %v1544
        %v1547 = vmul.u32 %v1542, %v1545
        %v1548 = vmul.u32 %v1543, %v1544
        %v1549 = vmul.u32 %v1543, %v1545
        %v1550 = vshll.u32 %v1547, 16
        %v1551 = vshrl.u32 %v1547, 16
        %v1552 = vshll.u32 %v1548, 16
        %v1553 = vshrl.u32 %v1548, 16
        %vm1554 = vc.u32 %v1546, %v1550
        %v1555 = vsel %vm1554, 1, 0
        %v1556 = vadd.s32 %v1546, %v1550
        %v1557 = vadd.s32 %v1549, %v1555
        %vm1558 = vc.u32 %v1556, %v1552
        %v1559 = vsel %vm1558, 1, 0
        %v1560 = vadd.s32 %v1556, %v1552
        %v1561 = vadd.s32 %v1557, %v1559
        %v1562 = vadd.s32 %v1561, %v1551
        %v1563 = vadd.s32 %v1562, %v1553
        %v1564 = vand.u32 %v1541, 65535
        %v1565 = vshrl.u32 %v1541, 16
        %v1566 = vand.u32 %v1536, 65535
        %v1567 = vshrl.u32 %v1536, 16
        %v1568 = vmul.u32 %v1564, %v1566
        %v1569 = vmul.u32 %v1564, %v1567
        %v1570 = vmul.u32 %v1565, %v1566
        %v1571 = vmul.u32 %v1565, %v1567
        %v1572 = vshll.u32 %v1569, 16
        %v1573 = vshrl.u32 %v1569, 16
        %v1574 = vshll.u32 %v1570, 16
        %v1575 = vshrl.u32 %v1570, 16
        %vm1576 = vc.u32 %v1568, %v1572
        %v1577 = vsel %vm1576, 1, 0
        %v1578 = vadd.s32 %v1568, %v1572
        %v1579 = vadd.s32 %v1571, %v1577
        %vm1580 = vc.u32 %v1578, %v1574
        %v1581 = vsel %vm1580, 1, 0
        %v1582 = vadd.s32 %v1578, %v1574
        %v1583 = vadd.s32 %v1579, %v1581
        %v1584 = vadd.s32 %v1583, %v1573
        %v1585 = vadd.s32 %v1584, %v1575
        %v1586 = vmul.u32 %v1541, %v1532
        %v1587 = vadd.s32 %v1563, %v1582
        %vm1588 = vc.u32 %v1563, %v1582
        %v1589 = vadd.s32 %v1585, 1
        %v1590 = vsel %vm1588, %v1589, %v1585
        %v1591 = vadd.s32 %v1586, %v1590
        %v1592 = vadd.s32 %v1591, 536870912
        %v1593 = vshrl.u32 %v1592, 30
        %v1594 = vshll.u32 %v1593, 30
        %v1595 = vsub.s32 %v1591, %v1594
        %vm1596 = vcmp.lt.s32.totalorder %v1595, 0
        %v1597 = vsub.s32 0, %v1595
        %v1598 = vsel %vm1596, %v1597, %v1595
        %v1599 = vclz %v1598
        %v1600 = vsub.s32 %v1599, 2
        %vm1601 = vcmp.gt.s32.totalorder 0, %v1600
        %v1602 = vsel %vm1601, 0, %v1600
        %v1603 = vsub.s32 32, %v1602
        %v1604 = vshll.u32 %v1595, %v1602
        %v1605 = vshrl.u32 %v1587, %v1603
        %v1606 = vor.u32 %v1604, %v1605
        %v1607 = vsub.s32 4294967266, %v1602
        %v1608 = vadd.s32 %v1607, 127
        %v1609 = vshll.u32 %v1608, 23
        %v1610 = vor.u32 4788187, %v1609
        %v1611 = vand.u32 2147483647, %v1610
        %v1613 = vcvt.s32.f32 %v1606
        %v1614 = vmul.f32 %v1613, %v1611
        %v1615 = vxor.u32 %v1614, 2147483648
        %v1616 = vsel %vm1495, %v1615, %v1614
        %v1617 = vsub.s32 4, %v1593
        %v1618 = vsel %vm1495, %v1617, %v1593
        %v1619 = vsel %vm1494, %v399, %v1616
        %v1620 = vsel %vm1494, 0, %v1618
        %v1621 = vmul.f32 %v1619, %v1619
        %v1622 = vmul.f32 %v1621, -0.001358992
        %v1623 = vadd.f32 %v1622, 0.041655596
        %v1624 = vmul.f32 %v1621, %v1623
        %v1625 = vadd.f32 %v1624, -0.4999988
        %v1626 = vmul.f32 %v1621, %v1625
        %v1627 = vadd.f32 1.0, %v1626
        %v1628 = vmul.f32 %v1619, %v1619
        %v1629 = vmul.f32 %v1628, -0.00019511016
        %v1630 = vadd.f32 %v1629, 0.008332121
        %v1631 = vmul.f32 %v1628, %v1630
        %v1632 = vadd.f32 %v1631, -0.16666654
        %v1633 = vmul.f32 %v1628, %v1632
        %v1634 = vadd.f32 %v1633, 1.0
        %v1635 = vmul.f32 %v1634, %v1619
        %vm1636 = vweird.f32 %v399
        %v1637 = vadd.s32 %v1620, 3
        %v1638 = vand.u32 %v1637, 3
        %vm1639 = vcmp.lt.s32.totalorder %v1638, 2
        %vm1640 = vcmp.eq.s32.totalorder %v1638, 0
        %v1641 = vxor.u32 %v1635, 2147483648
        %v1642 = vsel %vm1640, %v1627, %v1641
        %vm1643 = vcmp.eq.s32.totalorder %v1638, 2
        %v1644 = vxor.u32 %v1627, 2147483648
        %v1645 = vsel %vm1643, %v1644, %v1635
        %v1646 = vsel %vm1639, %v1642, %v1645
        %v1647 = vsel %vm1636, nan, %v1646
        %v1648 = vand.u32 2147483647, %v400
        %vm1649 = vcmp.le.f32.partialorder %v1648, 0.7853982
        %vm1650 = vcmp.lt.s32.totalorder %v400, 0
        %v1651 = vand.u32 %v400, 2139095040
        %v1652 = vshrl.u32 %v1651, 23
        %v1653 = vsub.s32 %v1652, 127
        %v1654 = vand.u32 2147483647, %v400
        %v1655 = vand.u32 %v1654, 8388607
        %v1656 = vor.u32 %v1655, 8388608
        %v1657 = vsub.s32 0, %v1656
        %v1658 = vadd.s32 %v1653, 1
        %vm1659 = vcmp.gt.s32.totalorder %v1658, 0
        %v1660 = vsel %vm1659, %v1658, 0
        %v1661 = vshrl.u32 %v1660, 5
        %v1662 = vand.u32 %v1660, 31
        %v1663 = vsub.s32 32, %v1662
        %v1664 = vshrl.u32 683565275, %v1663
        %v1665 = vshll.u32 683565275, %v1662
        %v1666 = vshrl.u32 2475754826, %v1663
        %v1667 = vor.u32 %v1665, %v1666
        %v1668 = vshll.u32 2475754826, %v1662
        %v1669 = vshrl.u32 2131351028, %v1663
        %v1670 = vor.u32 %v1668, %v1669
        %v1671 = vshll.u32 2131351028, %v1662
        %v1672 = vshrl.u32 2102212464, %v1663
        %v1673 = vor.u32 %v1671, %v1672
        %v1674 = vshll.u32 2102212464, %v1662
        %v1675 = vshrl.u32 920167782, %v1663
        %v1676 = vor.u32 %v1674, %v1675
        %v1677 = vshll.u32 920167782, %v1662
        %v1678 = vshrl.u32 1326507024, %v1663
        %v1679 = vor.u32 %v1677, %v1678
        %vm1680 = vcmp.lt.s32.totalorder %v1661, 1
        %vm1681 = vcmp.lt.s32.totalorder %v1661, 2
        %vm1682 = vcmp.lt.s32.totalorder %v1661, 3
        %vm1683 = vcmp.lt.s32.totalorder %v1661, 4
        %v1684 = vsel %vm1680, %v1664, %v1667
        %v1685 = vsel %vm1683, %v1673, 2102212464
        %v1686 = vsel %vm1682, %v1670, %v1685
        %v1687 = vsel %vm1681, %v1684, %v1686
        %v1688 = vsel %vm1680, %v1667, %v1670
        %v1689 = vsel %vm1683, %v1676, 920167782
        %v1690 = vsel %vm1682, %v1673, %v1689
        %v1691 = vsel %vm1681, %v1688, %v1690
        %v1692 = vsel %vm1680, %v1670, %v1673
        %v1693 = vsel %vm1683, %v1679, 1326507024
        %v1694 = vsel %vm1682, %v1676, %v1693
        %v1695 = vsel %vm1681, %v1692, %v1694
        %v1696 = vshll.u32 %v1656, 8
        %v1697 = vand.u32 %v1696, 65535
        %v1698 = vshrl.u32 %v1696, 16
        %v1699 = vand.u32 %v1695, 65535
        %v1700 = vshrl.u32 %v1695, 16
        %v1701 = vmul.u32 %v1697, %v1699
        %v1702 = vmul.u32 %v1697, %v1700
        %v1703 = vmul.u32 %v1698, %v1699
        %v1704 = vmul.u32 %v1698, %v1700
        %v1705 = vshll.u32 %v1702, 16
        %v1706 = vshrl.u32 %v1702, 16
        %v1707 = vshll.u32 %v1703, 16
        %v1708 = vshrl.u32 %v1703, 16
        %vm1709 = vc.u32 %v1701, %v1705
        %v1710 = vsel %vm1709, 1, 0
        %v1711 = vadd.s32 %v1701, %v1705
        %v1712 = vadd.s32 %v1704, %v1710
        %vm1713 = vc.u32 %v1711, %v1707
        %v1714 = vsel %vm1713, 1, 0
        %v1715 = vadd.s32 %v1711, %v1707
        %v1716 = vadd.s32 %v1712, %v1714
        %v1717 = vadd.s32 %v1716, %v1706
        %v1718 = vadd.s32 %v1717, %v1708
        %v1719 = vand.u32 %v1696, 65535
        %v1720 = vshrl.u32 %v1696, 16
        %v1721 = vand.u32 %v1691, 65535
        %v1722 = vshrl.u32 %v1691, 16
        %v1723 = vmul.u32 %v1719, %v1721
        %v1724 = vmul.u32 %v1719, %v1722
        %v1725 = vmul.u32 %v1720, %v1721
        %v1726 = vmul.u32 %v1720, %v1722
        %v1727 = vshll.u32 %v1724, 16
        %v1728 = vshrl.u32 %v1724, 16
        %v1729 = vshll.u32 %v1725, 16
        %v1730 = vshrl.u32 %v1725, 16
        %vm1731 = vc.u32 %v1723, %v1727
        %v1732 = vsel %vm1731, 1, 0
        %v1733 = vadd.s32 %v1723, %v1727
        %v1734 = vadd.s32 %v1726, %v1732
        %vm1735 = vc.u32 %v1733, %v1729
        %v1736 = vsel %vm1735, 1, 0
        %v1737 = vadd.s32 %v1733, %v1729
        %v1738 = vadd.s32 %v1734, %v1736
        %v1739 = vadd.s32 %v1738, %v1728
        %v1740 = vadd.s32 %v1739, %v1730
        %v1741 = vmul.u32 %v1696, %v1687
        %v1742 = vadd.s32 %v1718, %v1737
        %vm1743 = vc.u32 %v1718, %v1737
        %v1744 = vadd.s32 %v1740, 1
        %v1745 = vsel %vm1743, %v1744, %v1740
        %v1746 = vadd.s32 %v1741, %v1745
        %v1747 = vadd.s32 %v1746, 536870912
        %v1748 = vshrl.u32 %v1747, 30
        %v1749 = vshll.u32 %v1748, 30
        %v1750 = vsub.s32 %v1746, %v1749
        %vm1751 = vcmp.lt.s32.totalorder %v1750, 0
        %v1752 = vsub.s32 0, %v1750
        %v1753 = vsel %vm1751, %v1752, %v1750
        %v1754 = vclz %v1753
        %v1755 = vsub.s32 %v1754, 2
        %vm1756 = vcmp.gt.s32.totalorder 0, %v1755
        %v1757 = vsel %vm1756, 0, %v1755
        %v1758 = vsub.s32 32, %v1757
        %v1759 = vshll.u32 %v1750, %v1757
        %v1760 = vshrl.u32 %v1742, %v1758
        %v1761 = vor.u32 %v1759, %v1760
        %v1762 = vsub.s32 4294967266, %v1757
        %v1763 = vadd.s32 %v1762, 127
        %v1764 = vshll.u32 %v1763, 23
        %v1765 = vor.u32 4788187, %v1764
        %v1766 = vand.u32 2147483647, %v1765
        %v1768 = vcvt.s32.f32 %v1761
        %v1769 = vmul.f32 %v1768, %v1766
        %v1770 = vxor.u32 %v1769, 2147483648
        %v1771 = vsel %vm1650, %v1770, %v1769
        %v1772 = vsub.s32 4, %v1748
        %v1773 = vsel %vm1650, %v1772, %v1748
        %v1774 = vsel %vm1649, %v400, %v1771
        %v1775 = vsel %vm1649, 0, %v1773
        %v1776 = vmul.f32 %v1774, %v1774
        %v1777 = vmul.f32 %v1776, -0.001358992
        %v1778 = vadd.f32 %v1777, 0.041655596
        %v1779 = vmul.f32 %v1776, %v1778
        %v1780 = vadd.f32 %v1779, -0.4999988
        %v1781 = vmul.f32 %v1776, %v1780
        %v1782 = vadd.f32 1.0, %v1781
        %v1783 = vmul.f32 %v1774, %v1774
        %v1784 = vmul.f32 %v1783, -0.00019511016
        %v1785 = vadd.f32 %v1784, 0.008332121
        %v1786 = vmul.f32 %v1783, %v1785
        %v1787 = vadd.f32 %v1786, -0.16666654
        %v1788 = vmul.f32 %v1783, %v1787
        %v1789 = vadd.f32 %v1788, 1.0
        %v1790 = vmul.f32 %v1789, %v1774
        %vm1791 = vweird.f32 %v400
        %v1792 = vadd.s32 %v1775, 3
        %v1793 = vand.u32 %v1792, 3
        %vm1794 = vcmp.lt.s32.totalorder %v1793, 2
        %vm1795 = vcmp.eq.s32.totalorder %v1793, 0
        %v1796 = vxor.u32 %v1790, 2147483648
        %v1797 = vsel %vm1795, %v1782, %v1796
        %vm1798 = vcmp.eq.s32.totalorder %v1793, 2
        %v1799 = vxor.u32 %v1782, 2147483648
        %v1800 = vsel %vm1798, %v1799, %v1790
        %v1801 = vsel %vm1794, %v1797, %v1800
        %v1802 = vsel %vm1791, nan, %v1801
        %v1803 = vand.u32 2147483647, %v401
        %vm1804 = vcmp.le.f32.partialorder %v1803, 0.7853982
        %vm1805 = vcmp.lt.s32.totalorder %v401, 0
        %v1806 = vand.u32 %v401, 2139095040
        %v1807 = vshrl.u32 %v1806, 23
        %v1808 = vsub.s32 %v1807, 127
        %v1809 = vand.u32 2147483647, %v401
        %v1810 = vand.u32 %v1809, 8388607
        %v1811 = vor.u32 %v1810, 8388608
        %v1812 = vsub.s32 0, %v1811
        %v1813 = vadd.s32 %v1808, 1
        %vm1814 = vcmp.gt.s32.totalorder %v1813, 0
        %v1815 = vsel %vm1814, %v1813, 0
        %v1816 = vshrl.u32 %v1815, 5
        %v1817 = vand.u32 %v1815, 31
        %v1818 = vsub.s32 32, %v1817
        %v1819 = vshrl.u32 683565275, %v1818
        %v1820 = vshll.u32 683565275, %v1817
        %v1821 = vshrl.u32 2475754826, %v1818
        %v1822 = vor.u32 %v1820, %v1821
        %v1823 = vshll.u32 2475754826, %v1817
        %v1824 = vshrl.u32 2131351028, %v1818
        %v1825 = vor.u32 %v1823, %v1824
        %v1826 = vshll.u32 2131351028, %v1817
        %v1827 = vshrl.u32 2102212464, %v1818
        %v1828 = vor.u32 %v1826, %v1827
        %v1829 = vshll.u32 2102212464, %v1817
        %v1830 = vshrl.u32 920167782, %v1818
        %v1831 = vor.u32 %v1829, %v1830
        %v1832 = vshll.u32 920167782, %v1817
        %v1833 = vshrl.u32 1326507024, %v1818
        %v1834 = vor.u32 %v1832, %v1833
        %vm1835 = vcmp.lt.s32.totalorder %v1816, 1
        %vm1836 = vcmp.lt.s32.totalorder %v1816, 2
        %vm1837 = vcmp.lt.s32.totalorder %v1816, 3
        %vm1838 = vcmp.lt.s32.totalorder %v1816, 4
        %v1839 = vsel %vm1835, %v1819, %v1822
        %v1840 = vsel %vm1838, %v1828, 2102212464
        %v1841 = vsel %vm1837, %v1825, %v1840
        %v1842 = vsel %vm1836, %v1839, %v1841
        %v1843 = vsel %vm1835, %v1822, %v1825
        %v1844 = vsel %vm1838, %v1831, 920167782
        %v1845 = vsel %vm1837, %v1828, %v1844
        %v1846 = vsel %vm1836, %v1843, %v1845
        %v1847 = vsel %vm1835, %v1825, %v1828
        %v1848 = vsel %vm1838, %v1834, 1326507024
        %v1849 = vsel %vm1837, %v1831, %v1848
        %v1850 = vsel %vm1836, %v1847, %v1849
        %v1851 = vshll.u32 %v1811, 8
        %v1852 = vand.u32 %v1851, 65535
        %v1853 = vshrl.u32 %v1851, 16
        %v1854 = vand.u32 %v1850, 65535
        %v1855 = vshrl.u32 %v1850, 16
        %v1856 = vmul.u32 %v1852, %v1854
        %v1857 = vmul.u32 %v1852, %v1855
        %v1858 = vmul.u32 %v1853, %v1854
        %v1859 = vmul.u32 %v1853, %v1855
        %v1860 = vshll.u32 %v1857, 16
        %v1861 = vshrl.u32 %v1857, 16
        %v1862 = vshll.u32 %v1858, 16
        %v1863 = vshrl.u32 %v1858, 16
        %vm1864 = vc.u32 %v1856, %v1860
        %v1865 = vsel %vm1864, 1, 0
        %v1866 = vadd.s32 %v1856, %v1860
        %v1867 = vadd.s32 %v1859, %v1865
        %vm1868 = vc.u32 %v1866, %v1862
        %v1869 = vsel %vm1868, 1, 0
        %v1870 = vadd.s32 %v1866, %v1862
        %v1871 = vadd.s32 %v1867, %v1869
        %v1872 = vadd.s32 %v1871, %v1861
        %v1873 = vadd.s32 %v1872, %v1863
        %v1874 = vand.u32 %v1851, 65535
        %v1875 = vshrl.u32 %v1851, 16
        %v1876 = vand.u32 %v1846, 65535
        %v1877 = vshrl.u32 %v1846, 16
        %v1878 = vmul.u32 %v1874, %v1876
        %v1879 = vmul.u32 %v1874, %v1877
        %v1880 = vmul.u32 %v1875, %v1876
        %v1881 = vmul.u32 %v1875, %v1877
        %v1882 = vshll.u32 %v1879, 16
        %v1883 = vshrl.u32 %v1879, 16
        %v1884 = vshll.u32 %v1880, 16
        %v1885 = vshrl.u32 %v1880, 16
        %vm1886 = vc.u32 %v1878, %v1882
        %v1887 = vsel %vm1886, 1, 0
        %v1888 = vadd.s32 %v1878, %v1882
        %v1889 = vadd.s32 %v1881, %v1887
        %vm1890 = vc.u32 %v1888, %v1884
        %v1891 = vsel %vm1890, 1, 0
        %v1892 = vadd.s32 %v1888, %v1884
        %v1893 = vadd.s32 %v1889, %v1891
        %v1894 = vadd.s32 %v1893, %v1883
        %v1895 = vadd.s32 %v1894, %v1885
        %v1896 = vmul.u32 %v1851, %v1842
        %v1897 = vadd.s32 %v1873, %v1892
        %vm1898 = vc.u32 %v1873, %v1892
        %v1899 = vadd.s32 %v1895, 1
        %v1900 = vsel %vm1898, %v1899, %v1895
        %v1901 = vadd.s32 %v1896, %v1900
        %v1902 = vadd.s32 %v1901, 536870912
        %v1903 = vshrl.u32 %v1902, 30
        %v1904 = vshll.u32 %v1903, 30
        %v1905 = vsub.s32 %v1901, %v1904
        %vm1906 = vcmp.lt.s32.totalorder %v1905, 0
        %v1907 = vsub.s32 0, %v1905
        %v1908 = vsel %vm1906, %v1907, %v1905
        %v1909 = vclz %v1908
        %v1910 = vsub.s32 %v1909, 2
        %vm1911 = vcmp.gt.s32.totalorder 0, %v1910
        %v1912 = vsel %vm1911, 0, %v1910
        %v1913 = vsub.s32 32, %v1912
        %v1914 = vshll.u32 %v1905, %v1912
        %v1915 = vshrl.u32 %v1897, %v1913
        %v1916 = vor.u32 %v1914, %v1915
        %v1917 = vsub.s32 4294967266, %v1912
        %v1918 = vadd.s32 %v1917, 127
        %v1919 = vshll.u32 %v1918, 23
        %v1920 = vor.u32 4788187, %v1919
        %v1921 = vand.u32 2147483647, %v1920
        %v1923 = vcvt.s32.f32 %v1916
        %v1924 = vmul.f32 %v1923, %v1921
        %v1925 = vxor.u32 %v1924, 2147483648
        %v1926 = vsel %vm1805, %v1925, %v1924
        %v1927 = vsub.s32 4, %v1903
        %v1928 = vsel %vm1805, %v1927, %v1903
        %v1929 = vsel %vm1804, %v401, %v1926
        %v1930 = vsel %vm1804, 0, %v1928
        %v1931 = vmul.f32 %v1929, %v1929
        %v1932 = vmul.f32 %v1931, -0.001358992
        %v1933 = vadd.f32 %v1932, 0.041655596
        %v1934 = vmul.f32 %v1931, %v1933
        %v1935 = vadd.f32 %v1934, -0.4999988
        %v1936 = vmul.f32 %v1931, %v1935
        %v1937 = vadd.f32 1.0, %v1936
        %v1938 = vmul.f32 %v1929, %v1929
        %v1939 = vmul.f32 %v1938, -0.00019511016
        %v1940 = vadd.f32 %v1939, 0.008332121
        %v1941 = vmul.f32 %v1938, %v1940
        %v1942 = vadd.f32 %v1941, -0.16666654
        %v1943 = vmul.f32 %v1938, %v1942
        %v1944 = vadd.f32 %v1943, 1.0
        %v1945 = vmul.f32 %v1944, %v1929
        %vm1946 = vweird.f32 %v401
        %v1947 = vadd.s32 %v1930, 3
        %v1948 = vand.u32 %v1947, 3
        %vm1949 = vcmp.lt.s32.totalorder %v1948, 2
        %vm1950 = vcmp.eq.s32.totalorder %v1948, 0
        %v1951 = vxor.u32 %v1945, 2147483648
        %v1952 = vsel %vm1950, %v1937, %v1951
        %vm1953 = vcmp.eq.s32.totalorder %v1948, 2
        %v1954 = vxor.u32 %v1937, 2147483648
        %v1955 = vsel %vm1953, %v1954, %v1945
        %v1956 = vsel %vm1949, %v1952, %v1955
        %v1957 = vsel %vm1946, nan, %v1956
        %v1958 = vand.u32 2147483647, %v402
        %vm1959 = vcmp.le.f32.partialorder %v1958, 0.7853982
        %vm1960 = vcmp.lt.s32.totalorder %v402, 0
        %v1961 = vand.u32 %v402, 2139095040
        %v1962 = vshrl.u32 %v1961, 23
        %v1963 = vsub.s32 %v1962, 127
        %v1964 = vand.u32 2147483647, %v402
        %v1965 = vand.u32 %v1964, 8388607
        %v1966 = vor.u32 %v1965, 8388608
        %v1967 = vsub.s32 0, %v1966
        %v1968 = vadd.s32 %v1963, 1
        %vm1969 = vcmp.gt.s32.totalorder %v1968, 0
        %v1970 = vsel %vm1969, %v1968, 0
        %v1971 = vshrl.u32 %v1970, 5
        %v1972 = vand.u32 %v1970, 31
        %v1973 = vsub.s32 32, %v1972
        %v1974 = vshrl.u32 683565275, %v1973
        %v1975 = vshll.u32 683565275, %v1972
        %v1976 = vshrl.u32 2475754826, %v1973
        %v1977 = vor.u32 %v1975, %v1976
        %v1978 = vshll.u32 2475754826, %v1972
        %v1979 = vshrl.u32 2131351028, %v1973
        %v1980 = vor.u32 %v1978, %v1979
        %v1981 = vshll.u32 2131351028, %v1972
        %v1982 = vshrl.u32 2102212464, %v1973
        %v1983 = vor.u32 %v1981, %v1982
        %v1984 = vshll.u32 2102212464, %v1972
        %v1985 = vshrl.u32 920167782, %v1973
        %v1986 = vor.u32 %v1984, %v1985
        %v1987 = vshll.u32 920167782, %v1972
        %v1988 = vshrl.u32 1326507024, %v1973
        %v1989 = vor.u32 %v1987, %v1988
        %vm1990 = vcmp.lt.s32.totalorder %v1971, 1
        %vm1991 = vcmp.lt.s32.totalorder %v1971, 2
        %vm1992 = vcmp.lt.s32.totalorder %v1971, 3
        %vm1993 = vcmp.lt.s32.totalorder %v1971, 4
        %v1994 = vsel %vm1990, %v1974, %v1977
        %v1995 = vsel %vm1993, %v1983, 2102212464
        %v1996 = vsel %vm1992, %v1980, %v1995
        %v1997 = vsel %vm1991, %v1994, %v1996
        %v1998 = vsel %vm1990, %v1977, %v1980
        %v1999 = vsel %vm1993, %v1986, 920167782
        %v2000 = vsel %vm1992, %v1983, %v1999
        %v2001 = vsel %vm1991, %v1998, %v2000
        %v2002 = vsel %vm1990, %v1980, %v1983
        %v2003 = vsel %vm1993, %v1989, 1326507024
        %v2004 = vsel %vm1992, %v1986, %v2003
        %v2005 = vsel %vm1991, %v2002, %v2004
        %v2006 = vshll.u32 %v1966, 8
        %v2007 = vand.u32 %v2006, 65535
        %v2008 = vshrl.u32 %v2006, 16
        %v2009 = vand.u32 %v2005, 65535
        %v2010 = vshrl.u32 %v2005, 16
        %v2011 = vmul.u32 %v2007, %v2009
        %v2012 = vmul.u32 %v2007, %v2010
        %v2013 = vmul.u32 %v2008, %v2009
        %v2014 = vmul.u32 %v2008, %v2010
        %v2015 = vshll.u32 %v2012, 16
        %v2016 = vshrl.u32 %v2012, 16
        %v2017 = vshll.u32 %v2013, 16
        %v2018 = vshrl.u32 %v2013, 16
        %vm2019 = vc.u32 %v2011, %v2015
        %v2020 = vsel %vm2019, 1, 0
        %v2021 = vadd.s32 %v2011, %v2015
        %v2022 = vadd.s32 %v2014, %v2020
        %vm2023 = vc.u32 %v2021, %v2017
        %v2024 = vsel %vm2023, 1, 0
        %v2025 = vadd.s32 %v2021, %v2017
        %v2026 = vadd.s32 %v2022, %v2024
        %v2027 = vadd.s32 %v2026, %v2016
        %v2028 = vadd.s32 %v2027, %v2018
        %v2029 = vand.u32 %v2006, 65535
        %v2030 = vshrl.u32 %v2006, 16
        %v2031 = vand.u32 %v2001, 65535
        %v2032 = vshrl.u32 %v2001, 16
        %v2033 = vmul.u32 %v2029, %v2031
        %v2034 = vmul.u32 %v2029, %v2032
        %v2035 = vmul.u32 %v2030, %v2031
        %v2036 = vmul.u32 %v2030, %v2032
        %v2037 = vshll.u32 %v2034, 16
        %v2038 = vshrl.u32 %v2034, 16
        %v2039 = vshll.u32 %v2035, 16
        %v2040 = vshrl.u32 %v2035, 16
        %vm2041 = vc.u32 %v2033, %v2037
        %v2042 = vsel %vm2041, 1, 0
        %v2043 = vadd.s32 %v2033, %v2037
        %v2044 = vadd.s32 %v2036, %v2042
        %vm2045 = vc.u32 %v2043, %v2039
        %v2046 = vsel %vm2045, 1, 0
        %v2047 = vadd.s32 %v2043, %v2039
        %v2048 = vadd.s32 %v2044, %v2046
        %v2049 = vadd.s32 %v2048, %v2038
        %v2050 = vadd.s32 %v2049, %v2040
        %v2051 = vmul.u32 %v2006, %v1997
        %v2052 = vadd.s32 %v2028, %v2047
        %vm2053 = vc.u32 %v2028, %v2047
        %v2054 = vadd.s32 %v2050, 1
        %v2055 = vsel %vm2053, %v2054, %v2050
        %v2056 = vadd.s32 %v2051, %v2055
        %v2057 = vadd.s32 %v2056, 536870912
        %v2058 = vshrl.u32 %v2057, 30
        %v2059 = vshll.u32 %v2058, 30
        %v2060 = vsub.s32 %v2056, %v2059
        %vm2061 = vcmp.lt.s32.totalorder %v2060, 0
        %v2062 = vsub.s32 0, %v2060
        %v2063 = vsel %vm2061, %v2062, %v2060
        %v2064 = vclz %v2063
        %v2065 = vsub.s32 %v2064, 2
        %vm2066 = vcmp.gt.s32.totalorder 0, %v2065
        %v2067 = vsel %vm2066, 0, %v2065
        %v2068 = vsub.s32 32, %v2067
        %v2069 = vshll.u32 %v2060, %v2067
        %v2070 = vshrl.u32 %v2052, %v2068
        %v2071 = vor.u32 %v2069, %v2070
        %v2072 = vsub.s32 4294967266, %v2067
        %v2073 = vadd.s32 %v2072, 127
        %v2074 = vshll.u32 %v2073, 23
        %v2075 = vor.u32 4788187, %v2074
        %v2076 = vand.u32 2147483647, %v2075
        %v2078 = vcvt.s32.f32 %v2071
        %v2079 = vmul.f32 %v2078, %v2076
        %v2080 = vxor.u32 %v2079, 2147483648
        %v2081 = vsel %vm1960, %v2080, %v2079
        %v2082 = vsub.s32 4, %v2058
        %v2083 = vsel %vm1960, %v2082, %v2058
        %v2084 = vsel %vm1959, %v402, %v2081
        %v2085 = vsel %vm1959, 0, %v2083
        %v2086 = vmul.f32 %v2084, %v2084
        %v2087 = vmul.f32 %v2086, -0.001358992
        %v2088 = vadd.f32 %v2087, 0.041655596
        %v2089 = vmul.f32 %v2086, %v2088
        %v2090 = vadd.f32 %v2089, -0.4999988
        %v2091 = vmul.f32 %v2086, %v2090
        %v2092 = vadd.f32 1.0, %v2091
        %v2093 = vmul.f32 %v2084, %v2084
        %v2094 = vmul.f32 %v2093, -0.00019511016
        %v2095 = vadd.f32 %v2094, 0.008332121
        %v2096 = vmul.f32 %v2093, %v2095
        %v2097 = vadd.f32 %v2096, -0.16666654
        %v2098 = vmul.f32 %v2093, %v2097
        %v2099 = vadd.f32 %v2098, 1.0
        %v2100 = vmul.f32 %v2099, %v2084
        %vm2101 = vweird.f32 %v402
        %v2102 = vadd.s32 %v2085, 3
        %v2103 = vand.u32 %v2102, 3
        %vm2104 = vcmp.lt.s32.totalorder %v2103, 2
        %vm2105 = vcmp.eq.s32.totalorder %v2103, 0
        %v2106 = vxor.u32 %v2100, 2147483648
        %v2107 = vsel %vm2105, %v2092, %v2106
        %vm2108 = vcmp.eq.s32.totalorder %v2103, 2
        %v2109 = vxor.u32 %v2092, 2147483648
        %v2110 = vsel %vm2108, %v2109, %v2100
        %v2111 = vsel %vm2104, %v2107, %v2110
        %v2112 = vsel %vm2101, nan, %v2111
        %v2113 = vand.u32 2147483647, %v403
        %vm2114 = vcmp.le.f32.partialorder %v2113, 0.7853982
        %vm2115 = vcmp.lt.s32.totalorder %v403, 0
        %v2116 = vand.u32 %v403, 2139095040
        %v2117 = vshrl.u32 %v2116, 23
        %v2118 = vsub.s32 %v2117, 127
        %v2119 = vand.u32 2147483647, %v403
        %v2120 = vand.u32 %v2119, 8388607
        %v2121 = vor.u32 %v2120, 8388608
        %v2122 = vsub.s32 0, %v2121
        %v2123 = vadd.s32 %v2118, 1
        %vm2124 = vcmp.gt.s32.totalorder %v2123, 0
        %v2125 = vsel %vm2124, %v2123, 0
        %v2126 = vshrl.u32 %v2125, 5
        %v2127 = vand.u32 %v2125, 31
        %v2128 = vsub.s32 32, %v2127
        %v2129 = vshrl.u32 683565275, %v2128
        %v2130 = vshll.u32 683565275, %v2127
        %v2131 = vshrl.u32 2475754826, %v2128
        %v2132 = vor.u32 %v2130, %v2131
        %v2133 = vshll.u32 2475754826, %v2127
        %v2134 = vshrl.u32 2131351028, %v2128
        %v2135 = vor.u32 %v2133, %v2134
        %v2136 = vshll.u32 2131351028, %v2127
        %v2137 = vshrl.u32 2102212464, %v2128
        %v2138 = vor.u32 %v2136, %v2137
        %v2139 = vshll.u32 2102212464, %v2127
        %v2140 = vshrl.u32 920167782, %v2128
        %v2141 = vor.u32 %v2139, %v2140
        %v2142 = vshll.u32 920167782, %v2127
        %v2143 = vshrl.u32 1326507024, %v2128
        %v2144 = vor.u32 %v2142, %v2143
        %vm2145 = vcmp.lt.s32.totalorder %v2126, 1
        %vm2146 = vcmp.lt.s32.totalorder %v2126, 2
        %vm2147 = vcmp.lt.s32.totalorder %v2126, 3
        %vm2148 = vcmp.lt.s32.totalorder %v2126, 4
        %v2149 = vsel %vm2145, %v2129, %v2132
        %v2150 = vsel %vm2148, %v2138, 2102212464
        %v2151 = vsel %vm2147, %v2135, %v2150
        %v2152 = vsel %vm2146, %v2149, %v2151
        %v2153 = vsel %vm2145, %v2132, %v2135
        %v2154 = vsel %vm2148, %v2141, 920167782
        %v2155 = vsel %vm2147, %v2138, %v2154
        %v2156 = vsel %vm2146, %v2153, %v2155
        %v2157 = vsel %vm2145, %v2135, %v2138
        %v2158 = vsel %vm2148, %v2144, 1326507024
        %v2159 = vsel %vm2147, %v2141, %v2158
        %v2160 = vsel %vm2146, %v2157, %v2159
        %v2161 = vshll.u32 %v2121, 8
        %v2162 = vand.u32 %v2161, 65535
        %v2163 = vshrl.u32 %v2161, 16
        %v2164 = vand.u32 %v2160, 65535
        %v2165 = vshrl.u32 %v2160, 16
        %v2166 = vmul.u32 %v2162, %v2164
        %v2167 = vmul.u32 %v2162, %v2165
        %v2168 = vmul.u32 %v2163, %v2164
        %v2169 = vmul.u32 %v2163, %v2165
        %v2170 = vshll.u32 %v2167, 16
        %v2171 = vshrl.u32 %v2167, 16
        %v2172 = vshll.u32 %v2168, 16
        %v2173 = vshrl.u32 %v2168, 16
        %vm2174 = vc.u32 %v2166, %v2170
        %v2175 = vsel %vm2174, 1, 0
        %v2176 = vadd.s32 %v2166, %v2170
        %v2177 = vadd.s32 %v2169, %v2175
        %vm2178 = vc.u32 %v2176, %v2172
        %v2179 = vsel %vm2178, 1, 0
        %v2180 = vadd.s32 %v2176, %v2172
        %v2181 = vadd.s32 %v2177, %v2179
        %v2182 = vadd.s32 %v2181, %v2171
        %v2183 = vadd.s32 %v2182, %v2173
        %v2184 = vand.u32 %v2161, 65535
        %v2185 = vshrl.u32 %v2161, 16
        %v2186 = vand.u32 %v2156, 65535
        %v2187 = vshrl.u32 %v2156, 16
        %v2188 = vmul.u32 %v2184, %v2186
        %v2189 = vmul.u32 %v2184, %v2187
        %v2190 = vmul.u32 %v2185, %v2186
        %v2191 = vmul.u32 %v2185, %v2187
        %v2192 = vshll.u32 %v2189, 16
        %v2193 = vshrl.u32 %v2189, 16
        %v2194 = vshll.u32 %v2190, 16
        %v2195 = vshrl.u32 %v2190, 16
        %vm2196 = vc.u32 %v2188, %v2192
        %v2197 = vsel %vm2196, 1, 0
        %v2198 = vadd.s32 %v2188, %v2192
        %v2199 = vadd.s32 %v2191, %v2197
        %vm2200 = vc.u32 %v2198, %v2194
        %v2201 = vsel %vm2200, 1, 0
        %v2202 = vadd.s32 %v2198, %v2194
        %v2203 = vadd.s32 %v2199, %v2201
        %v2204 = vadd.s32 %v2203, %v2193
        %v2205 = vadd.s32 %v2204, %v2195
        %v2206 = vmul.u32 %v2161, %v2152
        %v2207 = vadd.s32 %v2183, %v2202
        %vm2208 = vc.u32 %v2183, %v2202
        %v2209 = vadd.s32 %v2205, 1
        %v2210 = vsel %vm2208, %v2209, %v2205
        %v2211 = vadd.s32 %v2206, %v2210
        %v2212 = vadd.s32 %v2211, 536870912
        %v2213 = vshrl.u32 %v2212, 30
        %v2214 = vshll.u32 %v2213, 30
        %v2215 = vsub.s32 %v2211, %v2214
        %vm2216 = vcmp.lt.s32.totalorder %v2215, 0
        %v2217 = vsub.s32 0, %v2215
        %v2218 = vsel %vm2216, %v2217, %v2215
        %v2219 = vclz %v2218
        %v2220 = vsub.s32 %v2219, 2
        %vm2221 = vcmp.gt.s32.totalorder 0, %v2220
        %v2222 = vsel %vm2221, 0, %v2220
        %v2223 = vsub.s32 32, %v2222
        %v2224 = vshll.u32 %v2215, %v2222
        %v2225 = vshrl.u32 %v2207, %v2223
        %v2226 = vor.u32 %v2224, %v2225
        %v2227 = vsub.s32 4294967266, %v2222
        %v2228 = vadd.s32 %v2227, 127
        %v2229 = vshll.u32 %v2228, 23
        %v2230 = vor.u32 4788187, %v2229
        %v2231 = vand.u32 2147483647, %v2230
        %v2233 = vcvt.s32.f32 %v2226
        %v2234 = vmul.f32 %v2233, %v2231
        %v2235 = vxor.u32 %v2234, 2147483648
        %v2236 = vsel %vm2115, %v2235, %v2234
        %v2237 = vsub.s32 4, %v2213
        %v2238 = vsel %vm2115, %v2237, %v2213
        %v2239 = vsel %vm2114, %v403, %v2236
        %v2240 = vsel %vm2114, 0, %v2238
        %v2241 = vmul.f32 %v2239, %v2239
        %v2242 = vmul.f32 %v2241, -0.001358992
        %v2243 = vadd.f32 %v2242, 0.041655596
        %v2244 = vmul.f32 %v2241, %v2243
        %v2245 = vadd.f32 %v2244, -0.4999988
        %v2246 = vmul.f32 %v2241, %v2245
        %v2247 = vadd.f32 1.0, %v2246
        %v2248 = vmul.f32 %v2239, %v2239
        %v2249 = vmul.f32 %v2248, -0.00019511016
        %v2250 = vadd.f32 %v2249, 0.008332121
        %v2251 = vmul.f32 %v2248, %v2250
        %v2252 = vadd.f32 %v2251, -0.16666654
        %v2253 = vmul.f32 %v2248, %v2252
        %v2254 = vadd.f32 %v2253, 1.0
        %v2255 = vmul.f32 %v2254, %v2239
        %vm2256 = vweird.f32 %v403
        %v2257 = vadd.s32 %v2240, 3
        %v2258 = vand.u32 %v2257, 3
        %vm2259 = vcmp.lt.s32.totalorder %v2258, 2
        %vm2260 = vcmp.eq.s32.totalorder %v2258, 0
        %v2261 = vxor.u32 %v2255, 2147483648
        %v2262 = vsel %vm2260, %v2247, %v2261
        %vm2263 = vcmp.eq.s32.totalorder %v2258, 2
        %v2264 = vxor.u32 %v2247, 2147483648
        %v2265 = vsel %vm2263, %v2264, %v2255
        %v2266 = vsel %vm2259, %v2262, %v2265
        %v2267 = vsel %vm2256, nan, %v2266
        %v2268 = vand.u32 2147483647, %v404
        %vm2269 = vcmp.le.f32.partialorder %v2268, 0.7853982
        %vm2270 = vcmp.lt.s32.totalorder %v404, 0
        %v2271 = vand.u32 %v404, 2139095040
        %v2272 = vshrl.u32 %v2271, 23
        %v2273 = vsub.s32 %v2272, 127
        %v2274 = vand.u32 2147483647, %v404
        %v2275 = vand.u32 %v2274, 8388607
        %v2276 = vor.u32 %v2275, 8388608
        %v2277 = vsub.s32 0, %v2276
        %v2278 = vadd.s32 %v2273, 1
        %vm2279 = vcmp.gt.s32.totalorder %v2278, 0
        %v2280 = vsel %vm2279, %v2278, 0
        %v2281 = vshrl.u32 %v2280, 5
        %v2282 = vand.u32 %v2280, 31
        %v2283 = vsub.s32 32, %v2282
        %v2284 = vshrl.u32 683565275, %v2283
        %v2285 = vshll.u32 683565275, %v2282
        %v2286 = vshrl.u32 2475754826, %v2283
        %v2287 = vor.u32 %v2285, %v2286
        %v2288 = vshll.u32 2475754826, %v2282
        %v2289 = vshrl.u32 2131351028, %v2283
        %v2290 = vor.u32 %v2288, %v2289
        %v2291 = vshll.u32 2131351028, %v2282
        %v2292 = vshrl.u32 2102212464, %v2283
        %v2293 = vor.u32 %v2291, %v2292
        %v2294 = vshll.u32 2102212464, %v2282
        %v2295 = vshrl.u32 920167782, %v2283
        %v2296 = vor.u32 %v2294, %v2295
        %v2297 = vshll.u32 920167782, %v2282
        %v2298 = vshrl.u32 1326507024, %v2283
        %v2299 = vor.u32 %v2297, %v2298
        %vm2300 = vcmp.lt.s32.totalorder %v2281, 1
        %vm2301 = vcmp.lt.s32.totalorder %v2281, 2
        %vm2302 = vcmp.lt.s32.totalorder %v2281, 3
        %vm2303 = vcmp.lt.s32.totalorder %v2281, 4
        %v2304 = vsel %vm2300, %v2284, %v2287
        %v2305 = vsel %vm2303, %v2293, 2102212464
        %v2306 = vsel %vm2302, %v2290, %v2305
        %v2307 = vsel %vm2301, %v2304, %v2306
        %v2308 = vsel %vm2300, %v2287, %v2290
        %v2309 = vsel %vm2303, %v2296, 920167782
        %v2310 = vsel %vm2302, %v2293, %v2309
        %v2311 = vsel %vm2301, %v2308, %v2310
        %v2312 = vsel %vm2300, %v2290, %v2293
        %v2313 = vsel %vm2303, %v2299, 1326507024
        %v2314 = vsel %vm2302, %v2296, %v2313
        %v2315 = vsel %vm2301, %v2312, %v2314
        %v2316 = vshll.u32 %v2276, 8
        %v2317 = vand.u32 %v2316, 65535
        %v2318 = vshrl.u32 %v2316, 16
        %v2319 = vand.u32 %v2315, 65535
        %v2320 = vshrl.u32 %v2315, 16
        %v2321 = vmul.u32 %v2317, %v2319
        %v2322 = vmul.u32 %v2317, %v2320
        %v2323 = vmul.u32 %v2318, %v2319
        %v2324 = vmul.u32 %v2318, %v2320
        %v2325 = vshll.u32 %v2322, 16
        %v2326 = vshrl.u32 %v2322, 16
        %v2327 = vshll.u32 %v2323, 16
        %v2328 = vshrl.u32 %v2323, 16
        %vm2329 = vc.u32 %v2321, %v2325
        %v2330 = vsel %vm2329, 1, 0
        %v2331 = vadd.s32 %v2321, %v2325
        %v2332 = vadd.s32 %v2324, %v2330
        %vm2333 = vc.u32 %v2331, %v2327
        %v2334 = vsel %vm2333, 1, 0
        %v2335 = vadd.s32 %v2331, %v2327
        %v2336 = vadd.s32 %v2332, %v2334
        %v2337 = vadd.s32 %v2336, %v2326
        %v2338 = vadd.s32 %v2337, %v2328
        %v2339 = vand.u32 %v2316, 65535
        %v2340 = vshrl.u32 %v2316, 16
        %v2341 = vand.u32 %v2311, 65535
        %v2342 = vshrl.u32 %v2311, 16
        %v2343 = vmul.u32 %v2339, %v2341
        %v2344 = vmul.u32 %v2339, %v2342
        %v2345 = vmul.u32 %v2340, %v2341
        %v2346 = vmul.u32 %v2340, %v2342
        %v2347 = vshll.u32 %v2344, 16
        %v2348 = vshrl.u32 %v2344, 16
        %v2349 = vshll.u32 %v2345, 16
        %v2350 = vshrl.u32 %v2345, 16
        %vm2351 = vc.u32 %v2343, %v2347
        %v2352 = vsel %vm2351, 1, 0
        %v2353 = vadd.s32 %v2343, %v2347
        %v2354 = vadd.s32 %v2346, %v2352
        %vm2355 = vc.u32 %v2353, %v2349
        %v2356 = vsel %vm2355, 1, 0
        %v2357 = vadd.s32 %v2353, %v2349
        %v2358 = vadd.s32 %v2354, %v2356
        %v2359 = vadd.s32 %v2358, %v2348
        %v2360 = vadd.s32 %v2359, %v2350
        %v2361 = vmul.u32 %v2316, %v2307
        %v2362 = vadd.s32 %v2338, %v2357
        %vm2363 = vc.u32 %v2338, %v2357
        %v2364 = vadd.s32 %v2360, 1
        %v2365 = vsel %vm2363, %v2364, %v2360
        %v2366 = vadd.s32 %v2361, %v2365
        %v2367 = vadd.s32 %v2366, 536870912
        %v2368 = vshrl.u32 %v2367, 30
        %v2369 = vshll.u32 %v2368, 30
        %v2370 = vsub.s32 %v2366, %v2369
        %vm2371 = vcmp.lt.s32.totalorder %v2370, 0
        %v2372 = vsub.s32 0, %v2370
        %v2373 = vsel %vm2371, %v2372, %v2370
        %v2374 = vclz %v2373
        %v2375 = vsub.s32 %v2374, 2
        %vm2376 = vcmp.gt.s32.totalorder 0, %v2375
        %v2377 = vsel %vm2376, 0, %v2375
        %v2378 = vsub.s32 32, %v2377
        %v2379 = vshll.u32 %v2370, %v2377
        %v2380 = vshrl.u32 %v2362, %v2378
        %v2381 = vor.u32 %v2379, %v2380
        %v2382 = vsub.s32 4294967266, %v2377
        %v2383 = vadd.s32 %v2382, 127
        %v2384 = vshll.u32 %v2383, 23
        %v2385 = vor.u32 4788187, %v2384
        %v2386 = vand.u32 2147483647, %v2385
        %v2388 = vcvt.s32.f32 %v2381
        %v2389 = vmul.f32 %v2388, %v2386
        %v2390 = vxor.u32 %v2389, 2147483648
        %v2391 = vsel %vm2270, %v2390, %v2389
        %v2392 = vsub.s32 4, %v2368
        %v2393 = vsel %vm2270, %v2392, %v2368
        %v2394 = vsel %vm2269, %v404, %v2391
        %v2395 = vsel %vm2269, 0, %v2393
        %v2396 = vmul.f32 %v2394, %v2394
        %v2397 = vmul.f32 %v2396, -0.001358992
        %v2398 = vadd.f32 %v2397, 0.041655596
        %v2399 = vmul.f32 %v2396, %v2398
        %v2400 = vadd.f32 %v2399, -0.4999988
        %v2401 = vmul.f32 %v2396, %v2400
        %v2402 = vadd.f32 1.0, %v2401
        %v2403 = vmul.f32 %v2394, %v2394
        %v2404 = vmul.f32 %v2403, -0.00019511016
        %v2405 = vadd.f32 %v2404, 0.008332121
        %v2406 = vmul.f32 %v2403, %v2405
        %v2407 = vadd.f32 %v2406, -0.16666654
        %v2408 = vmul.f32 %v2403, %v2407
        %v2409 = vadd.f32 %v2408, 1.0
        %v2410 = vmul.f32 %v2409, %v2394
        %vm2411 = vweird.f32 %v404
        %v2412 = vadd.s32 %v2395, 3
        %v2413 = vand.u32 %v2412, 3
        %vm2414 = vcmp.lt.s32.totalorder %v2413, 2
        %vm2415 = vcmp.eq.s32.totalorder %v2413, 0
        %v2416 = vxor.u32 %v2410, 2147483648
        %v2417 = vsel %vm2415, %v2402, %v2416
        %vm2418 = vcmp.eq.s32.totalorder %v2413, 2
        %v2419 = vxor.u32 %v2402, 2147483648
        %v2420 = vsel %vm2418, %v2419, %v2410
        %v2421 = vsel %vm2414, %v2417, %v2420
        %v2422 = vsel %vm2411, nan, %v2421
        %v2423 = vand.u32 2147483647, %v405
        %vm2424 = vcmp.le.f32.partialorder %v2423, 0.7853982
        %vm2425 = vcmp.lt.s32.totalorder %v405, 0
        %v2426 = vand.u32 %v405, 2139095040
        %v2427 = vshrl.u32 %v2426, 23
        %v2428 = vsub.s32 %v2427, 127
        %v2429 = vand.u32 2147483647, %v405
        %v2430 = vand.u32 %v2429, 8388607
        %v2431 = vor.u32 %v2430, 8388608
        %v2432 = vsub.s32 0, %v2431
        %v2433 = vadd.s32 %v2428, 1
        %vm2434 = vcmp.gt.s32.totalorder %v2433, 0
        %v2435 = vsel %vm2434, %v2433, 0
        %v2436 = vshrl.u32 %v2435, 5
        %v2437 = vand.u32 %v2435, 31
        %v2438 = vsub.s32 32, %v2437
        %v2439 = vshrl.u32 683565275, %v2438
        %v2440 = vshll.u32 683565275, %v2437
        %v2441 = vshrl.u32 2475754826, %v2438
        %v2442 = vor.u32 %v2440, %v2441
        %v2443 = vshll.u32 2475754826, %v2437
        %v2444 = vshrl.u32 2131351028, %v2438
        %v2445 = vor.u32 %v2443, %v2444
        %v2446 = vshll.u32 2131351028, %v2437
        %v2447 = vshrl.u32 2102212464, %v2438
        %v2448 = vor.u32 %v2446, %v2447
        %v2449 = vshll.u32 2102212464, %v2437
        %v2450 = vshrl.u32 920167782, %v2438
        %v2451 = vor.u32 %v2449, %v2450
        %v2452 = vshll.u32 920167782, %v2437
        %v2453 = vshrl.u32 1326507024, %v2438
        %v2454 = vor.u32 %v2452, %v2453
        %vm2455 = vcmp.lt.s32.totalorder %v2436, 1
        %vm2456 = vcmp.lt.s32.totalorder %v2436, 2
        %vm2457 = vcmp.lt.s32.totalorder %v2436, 3
        %vm2458 = vcmp.lt.s32.totalorder %v2436, 4
        %v2459 = vsel %vm2455, %v2439, %v2442
        %v2460 = vsel %vm2458, %v2448, 2102212464
        %v2461 = vsel %vm2457, %v2445, %v2460
        %v2462 = vsel %vm2456, %v2459, %v2461
        %v2463 = vsel %vm2455, %v2442, %v2445
        %v2464 = vsel %vm2458, %v2451, 920167782
        %v2465 = vsel %vm2457, %v2448, %v2464
        %v2466 = vsel %vm2456, %v2463, %v2465
        %v2467 = vsel %vm2455, %v2445, %v2448
        %v2468 = vsel %vm2458, %v2454, 1326507024
        %v2469 = vsel %vm2457, %v2451, %v2468
        %v2470 = vsel %vm2456, %v2467, %v2469
        %v2471 = vshll.u32 %v2431, 8
        %v2472 = vand.u32 %v2471, 65535
        %v2473 = vshrl.u32 %v2471, 16
        %v2474 = vand.u32 %v2470, 65535
        %v2475 = vshrl.u32 %v2470, 16
        %v2476 = vmul.u32 %v2472, %v2474
        %v2477 = vmul.u32 %v2472, %v2475
        %v2478 = vmul.u32 %v2473, %v2474
        %v2479 = vmul.u32 %v2473, %v2475
        %v2480 = vshll.u32 %v2477, 16
        %v2481 = vshrl.u32 %v2477, 16
        %v2482 = vshll.u32 %v2478, 16
        %v2483 = vshrl.u32 %v2478, 16
        %vm2484 = vc.u32 %v2476, %v2480
        %v2485 = vsel %vm2484, 1, 0
        %v2486 = vadd.s32 %v2476, %v2480
        %v2487 = vadd.s32 %v2479, %v2485
        %vm2488 = vc.u32 %v2486, %v2482
        %v2489 = vsel %vm2488, 1, 0
        %v2490 = vadd.s32 %v2486, %v2482
        %v2491 = vadd.s32 %v2487, %v2489
        %v2492 = vadd.s32 %v2491, %v2481
        %v2493 = vadd.s32 %v2492, %v2483
        %v2494 = vand.u32 %v2471, 65535
        %v2495 = vshrl.u32 %v2471, 16
        %v2496 = vand.u32 %v2466, 65535
        %v2497 = vshrl.u32 %v2466, 16
        %v2498 = vmul.u32 %v2494, %v2496
        %v2499 = vmul.u32 %v2494, %v2497
        %v2500 = vmul.u32 %v2495, %v2496
        %v2501 = vmul.u32 %v2495, %v2497
        %v2502 = vshll.u32 %v2499, 16
        %v2503 = vshrl.u32 %v2499, 16
        %v2504 = vshll.u32 %v2500, 16
        %v2505 = vshrl.u32 %v2500, 16
        %vm2506 = vc.u32 %v2498, %v2502
        %v2507 = vsel %vm2506, 1, 0
        %v2508 = vadd.s32 %v2498, %v2502
        %v2509 = vadd.s32 %v2501, %v2507
        %vm2510 = vc.u32 %v2508, %v2504
        %v2511 = vsel %vm2510, 1, 0
        %v2512 = vadd.s32 %v2508, %v2504
        %v2513 = vadd.s32 %v2509, %v2511
        %v2514 = vadd.s32 %v2513, %v2503
        %v2515 = vadd.s32 %v2514, %v2505
        %v2516 = vmul.u32 %v2471, %v2462
        %v2517 = vadd.s32 %v2493, %v2512
        %vm2518 = vc.u32 %v2493, %v2512
        %v2519 = vadd.s32 %v2515, 1
        %v2520 = vsel %vm2518, %v2519, %v2515
        %v2521 = vadd.s32 %v2516, %v2520
        %v2522 = vadd.s32 %v2521, 536870912
        %v2523 = vshrl.u32 %v2522, 30
        %v2524 = vshll.u32 %v2523, 30
        %v2525 = vsub.s32 %v2521, %v2524
        %vm2526 = vcmp.lt.s32.totalorder %v2525, 0
        %v2527 = vsub.s32 0, %v2525
        %v2528 = vsel %vm2526, %v2527, %v2525
        %v2529 = vclz %v2528
        %v2530 = vsub.s32 %v2529, 2
        %vm2531 = vcmp.gt.s32.totalorder 0, %v2530
        %v2532 = vsel %vm2531, 0, %v2530
        %v2533 = vsub.s32 32, %v2532
        %v2534 = vshll.u32 %v2525, %v2532
        %v2535 = vshrl.u32 %v2517, %v2533
        %v2536 = vor.u32 %v2534, %v2535
        %v2537 = vsub.s32 4294967266, %v2532
        %v2538 = vadd.s32 %v2537, 127
        %v2539 = vshll.u32 %v2538, 23
        %v2540 = vor.u32 4788187, %v2539
        %v2541 = vand.u32 2147483647, %v2540
        %v2543 = vcvt.s32.f32 %v2536
        %v2544 = vmul.f32 %v2543, %v2541
        %v2545 = vxor.u32 %v2544, 2147483648
        %v2546 = vsel %vm2425, %v2545, %v2544
        %v2547 = vsub.s32 4, %v2523
        %v2548 = vsel %vm2425, %v2547, %v2523
        %v2549 = vsel %vm2424, %v405, %v2546
        %v2550 = vsel %vm2424, 0, %v2548
        %v2551 = vmul.f32 %v2549, %v2549
        %v2552 = vmul.f32 %v2551, -0.001358992
        %v2553 = vadd.f32 %v2552, 0.041655596
        %v2554 = vmul.f32 %v2551, %v2553
        %v2555 = vadd.f32 %v2554, -0.4999988
        %v2556 = vmul.f32 %v2551, %v2555
        %v2557 = vadd.f32 1.0, %v2556
        %v2558 = vmul.f32 %v2549, %v2549
        %v2559 = vmul.f32 %v2558, -0.00019511016
        %v2560 = vadd.f32 %v2559, 0.008332121
        %v2561 = vmul.f32 %v2558, %v2560
        %v2562 = vadd.f32 %v2561, -0.16666654
        %v2563 = vmul.f32 %v2558, %v2562
        %v2564 = vadd.f32 %v2563, 1.0
        %v2565 = vmul.f32 %v2564, %v2549
        %vm2566 = vweird.f32 %v405
        %v2567 = vadd.s32 %v2550, 3
        %v2568 = vand.u32 %v2567, 3
        %vm2569 = vcmp.lt.s32.totalorder %v2568, 2
        %vm2570 = vcmp.eq.s32.totalorder %v2568, 0
        %v2571 = vxor.u32 %v2565, 2147483648
        %v2572 = vsel %vm2570, %v2557, %v2571
        %vm2573 = vcmp.eq.s32.totalorder %v2568, 2
        %v2574 = vxor.u32 %v2557, 2147483648
        %v2575 = vsel %vm2573, %v2574, %v2565
        %v2576 = vsel %vm2569, %v2572, %v2575
        %v2577 = vsel %vm2566, nan, %v2576
        %v2578 = vand.u32 2147483647, %v406
        %vm2579 = vcmp.le.f32.partialorder %v2578, 0.7853982
        %vm2580 = vcmp.lt.s32.totalorder %v406, 0
        %v2581 = vand.u32 %v406, 2139095040
        %v2582 = vshrl.u32 %v2581, 23
        %v2583 = vsub.s32 %v2582, 127
        %v2584 = vand.u32 2147483647, %v406
        %v2585 = vand.u32 %v2584, 8388607
        %v2586 = vor.u32 %v2585, 8388608
        %v2587 = vsub.s32 0, %v2586
        %v2588 = vadd.s32 %v2583, 1
        %vm2589 = vcmp.gt.s32.totalorder %v2588, 0
        %v2590 = vsel %vm2589, %v2588, 0
        %v2591 = vshrl.u32 %v2590, 5
        %v2592 = vand.u32 %v2590, 31
        %v2593 = vsub.s32 32, %v2592
        %v2594 = vshrl.u32 683565275, %v2593
        %v2595 = vshll.u32 683565275, %v2592
        %v2596 = vshrl.u32 2475754826, %v2593
        %v2597 = vor.u32 %v2595, %v2596
        %v2598 = vshll.u32 2475754826, %v2592
        %v2599 = vshrl.u32 2131351028, %v2593
        %v2600 = vor.u32 %v2598, %v2599
        %v2601 = vshll.u32 2131351028, %v2592
        %v2602 = vshrl.u32 2102212464, %v2593
        %v2603 = vor.u32 %v2601, %v2602
        %v2604 = vshll.u32 2102212464, %v2592
        %v2605 = vshrl.u32 920167782, %v2593
        %v2606 = vor.u32 %v2604, %v2605
        %v2607 = vshll.u32 920167782, %v2592
        %v2608 = vshrl.u32 1326507024, %v2593
        %v2609 = vor.u32 %v2607, %v2608
        %vm2610 = vcmp.lt.s32.totalorder %v2591, 1
        %vm2611 = vcmp.lt.s32.totalorder %v2591, 2
        %vm2612 = vcmp.lt.s32.totalorder %v2591, 3
        %vm2613 = vcmp.lt.s32.totalorder %v2591, 4
        %v2614 = vsel %vm2610, %v2594, %v2597
        %v2615 = vsel %vm2613, %v2603, 2102212464
        %v2616 = vsel %vm2612, %v2600, %v2615
        %v2617 = vsel %vm2611, %v2614, %v2616
        %v2618 = vsel %vm2610, %v2597, %v2600
        %v2619 = vsel %vm2613, %v2606, 920167782
        %v2620 = vsel %vm2612, %v2603, %v2619
        %v2621 = vsel %vm2611, %v2618, %v2620
        %v2622 = vsel %vm2610, %v2600, %v2603
        %v2623 = vsel %vm2613, %v2609, 1326507024
        %v2624 = vsel %vm2612, %v2606, %v2623
        %v2625 = vsel %vm2611, %v2622, %v2624
        %v2626 = vshll.u32 %v2586, 8
        %v2627 = vand.u32 %v2626, 65535
        %v2628 = vshrl.u32 %v2626, 16
        %v2629 = vand.u32 %v2625, 65535
        %v2630 = vshrl.u32 %v2625, 16
        %v2631 = vmul.u32 %v2627, %v2629
        %v2632 = vmul.u32 %v2627, %v2630
        %v2633 = vmul.u32 %v2628, %v2629
        %v2634 = vmul.u32 %v2628, %v2630
        %v2635 = vshll.u32 %v2632, 16
        %v2636 = vshrl.u32 %v2632, 16
        %v2637 = vshll.u32 %v2633, 16
        %v2638 = vshrl.u32 %v2633, 16
        %vm2639 = vc.u32 %v2631, %v2635
        %v2640 = vsel %vm2639, 1, 0
        %v2641 = vadd.s32 %v2631, %v2635
        %v2642 = vadd.s32 %v2634, %v2640
        %vm2643 = vc.u32 %v2641, %v2637
        %v2644 = vsel %vm2643, 1, 0
        %v2645 = vadd.s32 %v2641, %v2637
        %v2646 = vadd.s32 %v2642, %v2644
        %v2647 = vadd.s32 %v2646, %v2636
        %v2648 = vadd.s32 %v2647, %v2638
        %v2649 = vand.u32 %v2626, 65535
        %v2650 = vshrl.u32 %v2626, 16
        %v2651 = vand.u32 %v2621, 65535
        %v2652 = vshrl.u32 %v2621, 16
        %v2653 = vmul.u32 %v2649, %v2651
        %v2654 = vmul.u32 %v2649, %v2652
        %v2655 = vmul.u32 %v2650, %v2651
        %v2656 = vmul.u32 %v2650, %v2652
        %v2657 = vshll.u32 %v2654, 16
        %v2658 = vshrl.u32 %v2654, 16
        %v2659 = vshll.u32 %v2655, 16
        %v2660 = vshrl.u32 %v2655, 16
        %vm2661 = vc.u32 %v2653, %v2657
        %v2662 = vsel %vm2661, 1, 0
        %v2663 = vadd.s32 %v2653, %v2657
        %v2664 = vadd.s32 %v2656, %v2662
        %vm2665 = vc.u32 %v2663, %v2659
        %v2666 = vsel %vm2665, 1, 0
        %v2667 = vadd.s32 %v2663, %v2659
        %v2668 = vadd.s32 %v2664, %v2666
        %v2669 = vadd.s32 %v2668, %v2658
        %v2670 = vadd.s32 %v2669, %v2660
        %v2671 = vmul.u32 %v2626, %v2617
        %v2672 = vadd.s32 %v2648, %v2667
        %vm2673 = vc.u32 %v2648, %v2667
        %v2674 = vadd.s32 %v2670, 1
        %v2675 = vsel %vm2673, %v2674, %v2670
        %v2676 = vadd.s32 %v2671, %v2675
        %v2677 = vadd.s32 %v2676, 536870912
        %v2678 = vshrl.u32 %v2677, 30
        %v2679 = vshll.u32 %v2678, 30
        %v2680 = vsub.s32 %v2676, %v2679
        %vm2681 = vcmp.lt.s32.totalorder %v2680, 0
        %v2682 = vsub.s32 0, %v2680
        %v2683 = vsel %vm2681, %v2682, %v2680
        %v2684 = vclz %v2683
        %v2685 = vsub.s32 %v2684, 2
        %vm2686 = vcmp.gt.s32.totalorder 0, %v2685
        %v2687 = vsel %vm2686, 0, %v2685
        %v2688 = vsub.s32 32, %v2687
        %v2689 = vshll.u32 %v2680, %v2687
        %v2690 = vshrl.u32 %v2672, %v2688
        %v2691 = vor.u32 %v2689, %v2690
        %v2692 = vsub.s32 4294967266, %v2687
        %v2693 = vadd.s32 %v2692, 127
        %v2694 = vshll.u32 %v2693, 23
        %v2695 = vor.u32 4788187, %v2694
        %v2696 = vand.u32 2147483647, %v2695
        %v2698 = vcvt.s32.f32 %v2691
        %v2699 = vmul.f32 %v2698, %v2696
        %v2700 = vxor.u32 %v2699, 2147483648
        %v2701 = vsel %vm2580, %v2700, %v2699
        %v2702 = vsub.s32 4, %v2678
        %v2703 = vsel %vm2580, %v2702, %v2678
        %v2704 = vsel %vm2579, %v406, %v2701
        %v2705 = vsel %vm2579, 0, %v2703
        %v2706 = vmul.f32 %v2704, %v2704
        %v2707 = vmul.f32 %v2706, -0.001358992
        %v2708 = vadd.f32 %v2707, 0.041655596
        %v2709 = vmul.f32 %v2706, %v2708
        %v2710 = vadd.f32 %v2709, -0.4999988
        %v2711 = vmul.f32 %v2706, %v2710
        %v2712 = vadd.f32 1.0, %v2711
        %v2713 = vmul.f32 %v2704, %v2704
        %v2714 = vmul.f32 %v2713, -0.00019511016
        %v2715 = vadd.f32 %v2714, 0.008332121
        %v2716 = vmul.f32 %v2713, %v2715
        %v2717 = vadd.f32 %v2716, -0.16666654
        %v2718 = vmul.f32 %v2713, %v2717
        %v2719 = vadd.f32 %v2718, 1.0
        %v2720 = vmul.f32 %v2719, %v2704
        %vm2721 = vweird.f32 %v406
        %v2722 = vadd.s32 %v2705, 3
        %v2723 = vand.u32 %v2722, 3
        %vm2724 = vcmp.lt.s32.totalorder %v2723, 2
        %vm2725 = vcmp.eq.s32.totalorder %v2723, 0
        %v2726 = vxor.u32 %v2720, 2147483648
        %v2727 = vsel %vm2725, %v2712, %v2726
        %vm2728 = vcmp.eq.s32.totalorder %v2723, 2
        %v2729 = vxor.u32 %v2712, 2147483648
        %v2730 = vsel %vm2728, %v2729, %v2720
        %v2731 = vsel %vm2724, %v2727, %v2730
        %v2732 = vsel %vm2721, nan, %v2731
        %v2733 = vand.u32 2147483647, %v407
        %vm2734 = vcmp.le.f32.partialorder %v2733, 0.7853982
        %vm2735 = vcmp.lt.s32.totalorder %v407, 0
        %v2736 = vand.u32 %v407, 2139095040
        %v2737 = vshrl.u32 %v2736, 23
        %v2738 = vsub.s32 %v2737, 127
        %v2739 = vand.u32 2147483647, %v407
        %v2740 = vand.u32 %v2739, 8388607
        %v2741 = vor.u32 %v2740, 8388608
        %v2742 = vsub.s32 0, %v2741
        %v2743 = vadd.s32 %v2738, 1
        %vm2744 = vcmp.gt.s32.totalorder %v2743, 0
        %v2745 = vsel %vm2744, %v2743, 0
        %v2746 = vshrl.u32 %v2745, 5
        %v2747 = vand.u32 %v2745, 31
        %v2748 = vsub.s32 32, %v2747
        %v2749 = vshrl.u32 683565275, %v2748
        %v2750 = vshll.u32 683565275, %v2747
        %v2751 = vshrl.u32 2475754826, %v2748
        %v2752 = vor.u32 %v2750, %v2751
        %v2753 = vshll.u32 2475754826, %v2747
        %v2754 = vshrl.u32 2131351028, %v2748
        %v2755 = vor.u32 %v2753, %v2754
        %v2756 = vshll.u32 2131351028, %v2747
        %v2757 = vshrl.u32 2102212464, %v2748
        %v2758 = vor.u32 %v2756, %v2757
        %v2759 = vshll.u32 2102212464, %v2747
        %v2760 = vshrl.u32 920167782, %v2748
        %v2761 = vor.u32 %v2759, %v2760
        %v2762 = vshll.u32 920167782, %v2747
        %v2763 = vshrl.u32 1326507024, %v2748
        %v2764 = vor.u32 %v2762, %v2763
        %vm2765 = vcmp.lt.s32.totalorder %v2746, 1
        %vm2766 = vcmp.lt.s32.totalorder %v2746, 2
        %vm2767 = vcmp.lt.s32.totalorder %v2746, 3
        %vm2768 = vcmp.lt.s32.totalorder %v2746, 4
        %v2769 = vsel %vm2765, %v2749, %v2752
        %v2770 = vsel %vm2768, %v2758, 2102212464
        %v2771 = vsel %vm2767, %v2755, %v2770
        %v2772 = vsel %vm2766, %v2769, %v2771
        %v2773 = vsel %vm2765, %v2752, %v2755
        %v2774 = vsel %vm2768, %v2761, 920167782
        %v2775 = vsel %vm2767, %v2758, %v2774
        %v2776 = vsel %vm2766, %v2773, %v2775
        %v2777 = vsel %vm2765, %v2755, %v2758
        %v2778 = vsel %vm2768, %v2764, 1326507024
        %v2779 = vsel %vm2767, %v2761, %v2778
        %v2780 = vsel %vm2766, %v2777, %v2779
        %v2781 = vshll.u32 %v2741, 8
        %v2782 = vand.u32 %v2781, 65535
        %v2783 = vshrl.u32 %v2781, 16
        %v2784 = vand.u32 %v2780, 65535
        %v2785 = vshrl.u32 %v2780, 16
        %v2786 = vmul.u32 %v2782, %v2784
        %v2787 = vmul.u32 %v2782, %v2785
        %v2788 = vmul.u32 %v2783, %v2784
        %v2789 = vmul.u32 %v2783, %v2785
        %v2790 = vshll.u32 %v2787, 16
        %v2791 = vshrl.u32 %v2787, 16
        %v2792 = vshll.u32 %v2788, 16
        %v2793 = vshrl.u32 %v2788, 16
        %vm2794 = vc.u32 %v2786, %v2790
        %v2795 = vsel %vm2794, 1, 0
        %v2796 = vadd.s32 %v2786, %v2790
        %v2797 = vadd.s32 %v2789, %v2795
        %vm2798 = vc.u32 %v2796, %v2792
        %v2799 = vsel %vm2798, 1, 0
        %v2800 = vadd.s32 %v2796, %v2792
        %v2801 = vadd.s32 %v2797, %v2799
        %v2802 = vadd.s32 %v2801, %v2791
        %v2803 = vadd.s32 %v2802, %v2793
        %v2804 = vand.u32 %v2781, 65535
        %v2805 = vshrl.u32 %v2781, 16
        %v2806 = vand.u32 %v2776, 65535
        %v2807 = vshrl.u32 %v2776, 16
        %v2808 = vmul.u32 %v2804, %v2806
        %v2809 = vmul.u32 %v2804, %v2807
        %v2810 = vmul.u32 %v2805, %v2806
        %v2811 = vmul.u32 %v2805, %v2807
        %v2812 = vshll.u32 %v2809, 16
        %v2813 = vshrl.u32 %v2809, 16
        %v2814 = vshll.u32 %v2810, 16
        %v2815 = vshrl.u32 %v2810, 16
        %vm2816 = vc.u32 %v2808, %v2812
        %v2817 = vsel %vm2816, 1, 0
        %v2818 = vadd.s32 %v2808, %v2812
        %v2819 = vadd.s32 %v2811, %v2817
        %vm2820 = vc.u32 %v2818, %v2814
        %v2821 = vsel %vm2820, 1, 0
        %v2822 = vadd.s32 %v2818, %v2814
        %v2823 = vadd.s32 %v2819, %v2821
        %v2824 = vadd.s32 %v2823, %v2813
        %v2825 = vadd.s32 %v2824, %v2815
        %v2826 = vmul.u32 %v2781, %v2772
        %v2827 = vadd.s32 %v2803, %v2822
        %vm2828 = vc.u32 %v2803, %v2822
        %v2829 = vadd.s32 %v2825, 1
        %v2830 = vsel %vm2828, %v2829, %v2825
        %v2831 = vadd.s32 %v2826, %v2830
        %v2832 = vadd.s32 %v2831, 536870912
        %v2833 = vshrl.u32 %v2832, 30
        %v2834 = vshll.u32 %v2833, 30
        %v2835 = vsub.s32 %v2831, %v2834
        %vm2836 = vcmp.lt.s32.totalorder %v2835, 0
        %v2837 = vsub.s32 0, %v2835
        %v2838 = vsel %vm2836, %v2837, %v2835
        %v2839 = vclz %v2838
        %v2840 = vsub.s32 %v2839, 2
        %vm2841 = vcmp.gt.s32.totalorder 0, %v2840
        %v2842 = vsel %vm2841, 0, %v2840
        %v2843 = vsub.s32 32, %v2842
        %v2844 = vshll.u32 %v2835, %v2842
        %v2845 = vshrl.u32 %v2827, %v2843
        %v2846 = vor.u32 %v2844, %v2845
        %v2847 = vsub.s32 4294967266, %v2842
        %v2848 = vadd.s32 %v2847, 127
        %v2849 = vshll.u32 %v2848, 23
        %v2850 = vor.u32 4788187, %v2849
        %v2851 = vand.u32 2147483647, %v2850
        %v2853 = vcvt.s32.f32 %v2846
        %v2854 = vmul.f32 %v2853, %v2851
        %v2855 = vxor.u32 %v2854, 2147483648
        %v2856 = vsel %vm2735, %v2855, %v2854
        %v2857 = vsub.s32 4, %v2833
        %v2858 = vsel %vm2735, %v2857, %v2833
        %v2859 = vsel %vm2734, %v407, %v2856
        %v2860 = vsel %vm2734, 0, %v2858
        %v2861 = vmul.f32 %v2859, %v2859
        %v2862 = vmul.f32 %v2861, -0.001358992
        %v2863 = vadd.f32 %v2862, 0.041655596
        %v2864 = vmul.f32 %v2861, %v2863
        %v2865 = vadd.f32 %v2864, -0.4999988
        %v2866 = vmul.f32 %v2861, %v2865
        %v2867 = vadd.f32 1.0, %v2866
        %v2868 = vmul.f32 %v2859, %v2859
        %v2869 = vmul.f32 %v2868, -0.00019511016
        %v2870 = vadd.f32 %v2869, 0.008332121
        %v2871 = vmul.f32 %v2868, %v2870
        %v2872 = vadd.f32 %v2871, -0.16666654
        %v2873 = vmul.f32 %v2868, %v2872
        %v2874 = vadd.f32 %v2873, 1.0
        %v2875 = vmul.f32 %v2874, %v2859
        %vm2876 = vweird.f32 %v407
        %v2877 = vadd.s32 %v2860, 3
        %v2878 = vand.u32 %v2877, 3
        %vm2879 = vcmp.lt.s32.totalorder %v2878, 2
        %vm2880 = vcmp.eq.s32.totalorder %v2878, 0
        %v2881 = vxor.u32 %v2875, 2147483648
        %v2882 = vsel %vm2880, %v2867, %v2881
        %vm2883 = vcmp.eq.s32.totalorder %v2878, 2
        %v2884 = vxor.u32 %v2867, 2147483648
        %v2885 = vsel %vm2883, %v2884, %v2875
        %v2886 = vsel %vm2879, %v2882, %v2885
        %v2887 = vsel %vm2876, nan, %v2886
        %2888 = vst [vmem:[%s204] sm:$0xff] %v562
        %2889 = vst [vmem:[%s204 + $0x8] sm:$0xff] %v717
        %2890 = vst [vmem:[%s204 + $0x10] sm:$0xff] %v872
        %2891 = vst [vmem:[%s204 + $0x18] sm:$0xff] %v1027
        %2892 = vst [vmem:[%s204 + $0x20] sm:$0xff] %v1182
        %2893 = vst [vmem:[%s204 + $0x28] sm:$0xff] %v1337
        %2894 = vst [vmem:[%s204 + $0x30] sm:$0xff] %v1492
        %2895 = vst [vmem:[%s204 + $0x38] sm:$0xff] %v1647
        %2896 = vst [vmem:[%s204 + $0x40] sm:$0xff] %v1802
        %2897 = vst [vmem:[%s204 + $0x48] sm:$0xff] %v1957
        %2898 = vst [vmem:[%s204 + $0x50] sm:$0xff] %v2112
        %2899 = vst [vmem:[%s204 + $0x58] sm:$0xff] %v2267
        %2900 = vst [vmem:[%s204 + $0x60] sm:$0xff] %v2422
        %2901 = vst [vmem:[%s204 + $0x68] sm:$0xff] %v2577
        %2902 = vst [vmem:[%s204 + $0x70] sm:$0xff] %v2732
        %2903 = vst [vmem:[%s204 + $0x78] sm:$0xff] %v2887
        %s2904 = sand.u32 %s117, 1
        %s2905 = scalar_lea.sflag [#allocation3], %s2904
        %s2906 = sand.u32 %s117, 1
        %s2907 = smul.addr %s2906, 128
        %s2908 = scalar_lea.vmem [#allocation2], %s2907
        // Predicated region
        $region33: #{tpu_custom_call.1} parent=31 // pred_check
          %p2909 = pneg %p127
        $region34: #{tpu_custom_call.1} parent=31 // pred_check_branch
          %2911 = sbr.rel (%p2909) target = $region36
        $region35: #{tpu_custom_call.1} parent=31 // pred_region
          %s2912 = smul.u32 8, %s22
          %2914 = vsyncadd %s2905, 0
          %s2915 = smul.addr %s2912, 2
          %s2916 = smul.addr %s21, 32
          %s2917 = sadd.s32 %s2915, %s2916
          %s2918 = smul.addr %s2917, 8
          %s2919 = scalar_lea.hbm %s3, %s2918
          %s2920 = sshll.u32 %s2908, 4
          %s2921 = int_to_ptr.vmem [resolvable:$true] %s2920
          %s2922 = sshll.u32 %s2919, 4
          %s2923 = int_to_ptr.hbm [resolvable:$true] %s2922
          %2928 = dma.vmem_to_hbm [thread:$0]  %s2921, 2048, %s2923, %s2905, 256, 256, 16
        $region36: #{tpu_custom_call.1} parent=31 // pred_fallthru
          _
      $region32: #{tpu_custom_call.1} parent=5 // pred_fallthru
        _
      %p2929 = scmp.le.s32.totalorder 2, %s12
      // Predicated region
      $region37: #{tpu_custom_call.1} parent=5 // pred_check
        %p2930 = pneg %p2929
      $region38: #{tpu_custom_call.1} parent=5 // pred_check_branch
        %2932 = sbr.rel (%p2930) target = $region40
      $region39: #{tpu_custom_call.1} parent=5 // pred_region
        %s2933 = ssub.s32 %s12, 2
        // Predicated region
        $region41: #{tpu_custom_call.1} parent=39 // pred_check
          %p2934 = pneg %p133
        $region42: #{tpu_custom_call.1} parent=39 // pred_check_branch
          %2936 = sbr.rel (%p2934) target = $region44
        $region43: #{tpu_custom_call.1} parent=39 // pred_region
          %s2937 = sand.u32 %s118, 1
          %s2938 = scalar_lea.sflag [#allocation3], %s2937
          %s2939 = sand.u32 %s118, 1
          %s2940 = smul.addr %s2939, 128
          %s2941 = scalar_lea.vmem [#allocation2], %s2940
          %2943 = dma.done %s2938, 2048
        $region44: #{tpu_custom_call.1} parent=39 // pred_fallthru
          _
      $region40: #{tpu_custom_call.1} parent=5 // pred_fallthru
        _
    $region6: #{tpu_custom_call.1} parent=1 // loop_footer
      %s16 = sadd.s32 1, %s12
    $region7: #{tpu_custom_call.1} parent=1 // loop_footer_branch
      %11 = sbr.rel target = $region3
    $region8: #{tpu_custom_call.1} parent=1 // loop_exit
      _
    %2944 = vsyncpa [#allocation3], 1
    %s2945 = scalar_lea.sflag [#allocation3], 1
    %2946 = vsyncpa %s2945, 1

</llo_original>
